<compile_context>
chip_gen: v7x
topology: tpu7x:2x2x1
jax: 0.10.0
libtpu: 0.0.40
codegen_flags: <defaults>
</compile_context>

<pallas_src>
import functools

import jax
import jax.numpy as jnp
from jax.experimental import pallas as pl
from jax.experimental.pallas import tpu as pltpu


def _rup(x, m):
    return ((x + m - 1) // m) * m


# 8-sublane-aligned row slots inside the packed vector blob.
_V_SLOTS = {"b1": 0, "g1": 1, "be1": 2, "b2": 3, "g2": 4, "be2": 5, "ba": 6, "wq": 7}
_V_ROWS = 8 * len(_V_SLOTS)  # 64


def _layernorm(x, gamma, beta, eps=1e-5):
    # x: [B, D]; gamma/beta: [1, D]   (biased variance, like torch.nn.LayerNorm)
    mean = jnp.mean(x, axis=-1, keepdims=True)
    centered = x - mean
    var = jnp.mean(centered * centered, axis=-1, keepdims=True)
    inv = jax.lax.rsqrt(var + eps)  # EUP transcendental slot (effectively free)
    return centered * inv * gamma + beta


def critic_kernel(state_ref, action_ref, w_ref, v_ref, bq_ref, out_ref, *, dims):
    input_dim, fc1, fc2, na = dims
    r_w2 = _rup(input_dim, 8)
    r_wa = r_w2 + _rup(fc1, 8)
    c = pl.program_id(0)  # critic index (e.g. 0 = online, 1 = target)

    state = state_ref[...]   # [TB, input_dim]
    action = action_ref[...]  # [TB, na]

    # Static, tile-aligned slices of the packed parameter blobs.
    w1 = w_ref[0:input_dim, 0:fc1]
    w2 = w_ref[r_w2:r_w2 + fc1, 0:fc2]
    wa = w_ref[r_wa:r_wa + na, 0:fc2]

    def vec(name, d):
        r = 8 * _V_SLOTS[name]
        return v_ref[r:r + 1, 0:d]

    b1, g1, be1 = vec("b1", fc1), vec("g1", fc1), vec("be1", fc1)
    b2, g2, be2 = vec("b2", fc2), vec("g2", fc2), vec("be2", fc2)
    ba = vec("ba", fc2)
    r_wq = 8 * _V_SLOTS["wq"]
    wq8 = v_ref[r_wq:r_wq + 8, 0:fc2]  # [8, fc2], q weight replicated over sublanes

    # fc1 -> LayerNorm -> ReLU   (MXU matmul, f32 accumulate)
    sv = jnp.dot(state, w1, preferred_element_type=jnp.float32) + b1
    sv = jnp.maximum(_layernorm(sv, g1, be1), 0.0)

    # fc2 -> LayerNorm
    sv = jnp.dot(sv, w2, preferred_element_type=jnp.float32) + b2
    sv = _layernorm(sv, g2, be2)

    # action branch: Linear -> ReLU
    av = jnp.dot(action, wa, preferred_element_type=jnp.float32) + ba
    av = jnp.maximum(av, 0.0)

    # combine -> ReLU
    sa = jnp.maximum(sv + av, 0.0)  # [TB, fc2]

    # q head on the MXU (frees the XLU for the LayerNorm reduces): contract the
    # fc2 axis of the replicated wq rows with the fc2 axis of sa -> lane-dense
    # [8, TB] result (8 identical rows).  Same pattern as a QK^T matmul.
    q8 = jax.lax.dot_general(wq8, sa, (((1,), (1,)), ((), ())),
                             preferred_element_type=jnp.float32)
    out_ref[...] = (q8 + bq_ref[c]).astype(out_ref.dtype)


def pack_params(p, dims):
    """Pack one critic's 12 parameter tensors into (w_blob, v_blob, bq)."""
    input_dim, fc1, fc2, na = dims
    maxd = max(fc1, fc2)
    r_w2 = _rup(input_dim, 8)
    r_wa = r_w2 + _rup(fc1, 8)
    rows = r_wa + _rup(na, 8)

    w_blob = jnp.zeros((rows, maxd), jnp.float32)
    w_blob = w_blob.at[0:input_dim, 0:fc1].set(p["w1"])
    w_blob = w_blob.at[r_w2:r_w2 + fc1, 0:fc2].set(p["w2"])
    w_blob = w_blob.at[r_wa:r_wa + na, 0:fc2].set(p["wa"])

    v_blob = jnp.zeros((_V_ROWS, maxd), jnp.float32)

    def put(blob, name, vec, d):
        # Pre-broadcast across the slot's 8 sublane rows so kernel slices start
        # on a tile-aligned row (and wq arrives already replicated for the MXU).
        r = 8 * _V_SLOTS[name]
        return blob.at[r:r + 8, 0:d].set(jnp.broadcast_to(vec.reshape(1, d), (8, d)))

    v_blob = put(v_blob, "b1", p["b1"], fc1)
    v_blob = put(v_blob, "g1", p["g1"], fc1)
    v_blob = put(v_blob, "be1", p["be1"], fc1)
    v_blob = put(v_blob, "b2", p["b2"], fc2)
    v_blob = put(v_blob, "g2", p["g2"], fc2)
    v_blob = put(v_blob, "be2", p["be2"], fc2)
    v_blob = put(v_blob, "ba", p["ba"], fc2)
    v_blob = put(v_blob, "wq", p["wq"][:, 0], fc2)  # (fc2,1) -> row

    bq = p["bq"].reshape(())  # scalar, lives in SMEM at call time
    return w_blob, v_blob, bq


def critic_forward(state, action, w_blobs, v_blobs, bqs, dims, *, block_b=2048):
    """Fused forward for C stacked critics (e.g. online + target).

    w_blobs: [C, rows, maxd], v_blobs: [C, 64, maxd], bqs: [C].
    Returns q values of shape [C, B, 1].
    """
    input_dim, fc1, fc2, na = dims
    C, rows_w, maxd = w_blobs.shape
    rows_v = v_blobs.shape[1]
    B = state.shape[0]

    # Batch tile: multiple of 128 (lane-dense output rows), capped at block_b,
    # and sized so the batch axis yields >= 2 grid steps when the batch allows
    # it (v7x megacore).  Activations are tiny, so even TB=2048 double-buffered
    # is a few MiB (fine for v7x's 64 MiB VMEM).
    units = _rup(B, 128) // 128
    TB = min(block_b, max(128, pl.cdiv(units, 2) * 128))
    Bp = _rup(_rup(B, 128), TB)
    nb = Bp // TB
    if Bp != B:
        state = jnp.pad(state, ((0, Bp - B), (0, 0)))
        action = jnp.pad(action, ((0, Bp - B), (0, 0)))

    kernel = functools.partial(critic_kernel, dims=dims)

    # Advisory cost hint so XLA schedules the rest of the DDPG step around us.
    flops = 2 * C * Bp * (input_dim * fc1 + fc1 * fc2 + na * fc2 + 8 * fc2) \
        + 10 * C * Bp * (fc1 + fc2)
    bytes_accessed = 4 * (Bp * (input_dim + na)
                          + C * (rows_w * maxd + rows_v * maxd + 8 * Bp))
    cost = pl.CostEstimate(flops=int(flops), transcendentals=int(2 * C * Bp),
                           bytes_accessed=int(bytes_accessed))

    out = pl.pallas_call(
        kernel,
        out_shape=jax.ShapeDtypeStruct((C * nb, 8, TB), jnp.float32),
        grid=(C, nb),
        in_specs=[
            pl.BlockSpec((TB, input_dim), lambda c, i: (i, 0)),
            pl.BlockSpec((TB, na), lambda c, i: (i, 0)),
            # Per-critic parameter blobs: index only on the critic axis ->
            # VMEM-resident across all batch tiles of that critic.
            pl.BlockSpec((None, rows_w, maxd), lambda c, i: (c, 0, 0)),
            pl.BlockSpec((None, rows_v, maxd), lambda c, i: (c, 0, 0)),
            # Scalar q-head biases live in SMEM (one scalar read per step).
            pl.BlockSpec(memory_space=pltpu.MemorySpace.SMEM),
        ],
        out_specs=pl.BlockSpec((None, 8, TB), lambda c, i: (c * nb + i, 0, 0)),
        compiler_params=pltpu.CompilerParams(
            dimension_semantics=("parallel", "parallel")),
        cost_estimate=cost,
    )(state, action, w_blobs, v_blobs, bqs)

    # (C*nb, 8, TB): all 8 sublane rows identical; take row 0, undo batch tiling.
    q = out[:, 0, :].reshape(C, Bp)[:, :B, None]
    return q


def init_params(key, input_dim, fc1_dims, fc2_dims, no_actions):
    ks = jax.random.split(key, 8)
    f1 = 1.0 / jnp.sqrt(fc1_dims)      # fc1.weight.size()[0] == fc1_dims (out_features)
    f2 = 1.0 / jnp.sqrt(fc2_dims)      # fc2.weight.size()[0] == fc2_dims
    fa = 1.0 / jnp.sqrt(no_actions)    # default PyTorch Linear bound for action_value
    f3 = 0.003
    u = lambda k, shp, r: jax.random.uniform(k, shp, jnp.float32, -r, r)
    return {
        # weights stored [in, out] (transposed vs PyTorch)
        "w1": u(ks[0], (input_dim, fc1_dims), f1),
        "b1": u(ks[1], (1, fc1_dims), f1),
        "g1": jnp.ones((1, fc1_dims), jnp.float32),    # LayerNorm gamma
        "be1": jnp.zeros((1, fc1_dims), jnp.float32),  # LayerNorm beta
        "w2": u(ks[2], (fc1_dims, fc2_dims), f2),
        "b2": u(ks[3], (1, fc2_dims), f2),
        "g2": jnp.ones((1, fc2_dims), jnp.float32),
        "be2": jnp.zeros((1, fc2_dims), jnp.float32),
        "wa": u(ks[4], (no_actions, fc2_dims), fa),
        "ba": u(ks[5], (1, fc2_dims), fa),
        "wq": u(ks[6], (fc2_dims, 1), f3),
        "bq": u(ks[7], (1, 1), f3),
    }


def critic_ref(state, action, p):
    """Pure-JAX reference for correctness check."""
    def ln(x, g, b, eps=1e-5):
        m = jnp.mean(x, -1, keepdims=True)
        v = jnp.mean((x - m) ** 2, -1, keepdims=True)
        return (x - m) / jnp.sqrt(v + eps) * g + b
    sv = jax.nn.relu(ln(state @ p["w1"] + p["b1"], p["g1"], p["be1"]))
    sv = ln(sv @ p["w2"] + p["b2"], p["g2"], p["be2"])
    av = jax.nn.relu(action @ p["wa"] + p["ba"])
    sa = jax.nn.relu(sv + av)
    return sa @ p["wq"] + p["bq"]


if __name__ == "__main__":
    key = jax.random.PRNGKey(0)
    k_s, k_a, k_p1, k_p2 = jax.random.split(key, 4)

    B, input_dim, fc1_dims, fc2_dims, no_actions = 8, 16, 64, 32, 4
    dims = (input_dim, fc1_dims, fc2_dims, no_actions)

    state = jax.random.normal(k_s, (B, input_dim), jnp.float32)
    action = jax.random.normal(k_a, (B, no_actions), jnp.float32)

    # Online + target critics fused into one pallas_call (one launch, shared
    # activation tiles, one critic per TensorCore on v7x).
    params_online = init_params(k_p1, *dims)
    params_target = init_params(k_p2, *dims)

    packed = [pack_params(p, dims) for p in (params_online, params_target)]
    w_blobs = jnp.stack([pk[0] for pk in packed])
    v_blobs = jnp.stack([pk[1] for pk in packed])
    bqs = jnp.stack([pk[2] for pk in packed])

    q = critic_forward(state, action, w_blobs, v_blobs, bqs, dims)
    q = jax.block_until_ready(q)

    ref_online = critic_ref(state, action, params_online)
    ref_target = critic_ref(state, action, params_target)
    assert q.shape == (2, B, 1)
    assert jnp.allclose(q[0], ref_online, atol=1e-4, rtol=1e-4)
    assert jnp.allclose(q[1], ref_target, atol=1e-4, rtol=1e-4)

    print("KERNEL_OK")
</pallas_src>

<mosaic_0001>
module attributes {stable_mosaic.version = 11 : i64} {
  func.func @critic_kernel(%arg0: i32, %arg1: i32, %arg2: memref<128x16xf32, #tpu.memory_space<vmem>>, %arg3: memref<128x4xf32, #tpu.memory_space<vmem>>, %arg4: memref<1x88x64xf32, #tpu.memory_space<vmem>>, %arg5: memref<1x64x64xf32, #tpu.memory_space<vmem>>, %arg6: memref<2xf32, #tpu.memory_space<smem>>, %arg7: memref<1x8x128xf32, #tpu.memory_space<vmem>>) attributes {dimension_semantics = [#tpu.dimension_semantics<parallel>, #tpu.dimension_semantics<parallel>], iteration_bounds = array<i64: 2, 1>, scalar_prefetch = 0 : i64, scratch_operands = 0 : i64, tpu.core_type = #tpu.core_type<tc>, window_params = [{transform_indices = @transform_0, window_bounds = array<i64: 128, 16>}, {transform_indices = @transform_1, window_bounds = array<i64: 128, 4>}, {transform_indices = @transform_2, window_bounds = array<i64: 1, 88, 64>}, {transform_indices = @transform_3, window_bounds = array<i64: 1, 64, 64>}, {transform_indices = @transform_4, window_bounds = array<i64: 2>}, {transform_indices = @transform_5, window_bounds = array<i64: 1, 8, 128>}]} {
    %c0 = arith.constant 0 : index
    %c0_0 = arith.constant 0 : index
    %0 = vector.load %arg2[%c0, %c0_0] : memref<128x16xf32, #tpu.memory_space<vmem>>, vector<128x16xf32>
    %c0_1 = arith.constant 0 : index
    %c0_2 = arith.constant 0 : index
    %1 = vector.load %arg3[%c0_1, %c0_2] : memref<128x4xf32, #tpu.memory_space<vmem>>, vector<128x4xf32>
    %c0_3 = arith.constant 0 : index
    %c0_4 = arith.constant 0 : index
    %c0_5 = arith.constant 0 : index
    %2 = vector.load %arg4[%c0_3, %c0_4, %c0_5] : memref<1x88x64xf32, #tpu.memory_space<vmem>>, vector<1x16x64xf32>
    %3 = vector.shape_cast %2 : vector<1x16x64xf32> to vector<16x64xf32>
    %c0_6 = arith.constant 0 : index
    %c16 = arith.constant 16 : index
    %c0_7 = arith.constant 0 : index
    %4 = vector.load %arg4[%c0_6, %c16, %c0_7] : memref<1x88x64xf32, #tpu.memory_space<vmem>>, vector<1x64x32xf32>
    %5 = vector.shape_cast %4 : vector<1x64x32xf32> to vector<64x32xf32>
    %c0_8 = arith.constant 0 : index
    %c80 = arith.constant 80 : index
    %c0_9 = arith.constant 0 : index
    %6 = vector.load %arg4[%c0_8, %c80, %c0_9] : memref<1x88x64xf32, #tpu.memory_space<vmem>>, vector<1x4x32xf32>
    %7 = vector.shape_cast %6 : vector<1x4x32xf32> to vector<4x32xf32>
    %c0_10 = arith.constant 0 : index
    %c0_11 = arith.constant 0 : index
    %c0_12 = arith.constant 0 : index
    %8 = vector.load %arg5[%c0_10, %c0_11, %c0_12] : memref<1x64x64xf32, #tpu.memory_space<vmem>>, vector<1x1x64xf32>
    %9 = vector.shape_cast %8 : vector<1x1x64xf32> to vector<1x64xf32>
    %c0_13 = arith.constant 0 : index
    %c8 = arith.constant 8 : index
    %c0_14 = arith.constant 0 : index
    %10 = vector.load %arg5[%c0_13, %c8, %c0_14] : memref<1x64x64xf32, #tpu.memory_space<vmem>>, vector<1x1x64xf32>
    %11 = vector.shape_cast %10 : vector<1x1x64xf32> to vector<1x64xf32>
    %c0_15 = arith.constant 0 : index
    %c16_16 = arith.constant 16 : index
    %c0_17 = arith.constant 0 : index
    %12 = vector.load %arg5[%c0_15, %c16_16, %c0_17] : memref<1x64x64xf32, #tpu.memory_space<vmem>>, vector<1x1x64xf32>
    %13 = vector.shape_cast %12 : vector<1x1x64xf32> to vector<1x64xf32>
    %c0_18 = arith.constant 0 : index
    %c24 = arith.constant 24 : index
    %c0_19 = arith.constant 0 : index
    %14 = vector.load %arg5[%c0_18, %c24, %c0_19] : memref<1x64x64xf32, #tpu.memory_space<vmem>>, vector<1x1x32xf32>
    %15 = vector.shape_cast %14 : vector<1x1x32xf32> to vector<1x32xf32>
    %c0_20 = arith.constant 0 : index
    %c32 = arith.constant 32 : index
    %c0_21 = arith.constant 0 : index
    %16 = vector.load %arg5[%c0_20, %c32, %c0_21] : memref<1x64x64xf32, #tpu.memory_space<vmem>>, vector<1x1x32xf32>
    %17 = vector.shape_cast %16 : vector<1x1x32xf32> to vector<1x32xf32>
    %c0_22 = arith.constant 0 : index
    %c40 = arith.constant 40 : index
    %c0_23 = arith.constant 0 : index
    %18 = vector.load %arg5[%c0_22, %c40, %c0_23] : memref<1x64x64xf32, #tpu.memory_space<vmem>>, vector<1x1x32xf32>
    %19 = vector.shape_cast %18 : vector<1x1x32xf32> to vector<1x32xf32>
    %c0_24 = arith.constant 0 : index
    %c48 = arith.constant 48 : index
    %c0_25 = arith.constant 0 : index
    %20 = vector.load %arg5[%c0_24, %c48, %c0_25] : memref<1x64x64xf32, #tpu.memory_space<vmem>>, vector<1x1x32xf32>
    %21 = vector.shape_cast %20 : vector<1x1x32xf32> to vector<1x32xf32>
    %c0_26 = arith.constant 0 : index
    %c56 = arith.constant 56 : index
    %c0_27 = arith.constant 0 : index
    %22 = vector.load %arg5[%c0_26, %c56, %c0_27] : memref<1x64x64xf32, #tpu.memory_space<vmem>>, vector<1x8x32xf32>
    %23 = vector.shape_cast %22 : vector<1x8x32xf32> to vector<8x32xf32>
    %cst = arith.constant dense<0.000000e+00> : vector<128x64xf32>
    %24 = tpu.matmul %0, %3, %cst {dimension_numbers = #tpu.dot_dimension_numbers<[1], [0], [0], [1], [0, 0, 1, 1], [], []>} : vector<128x16xf32>, vector<16x64xf32>, vector<128x64xf32> -> vector<128x64xf32>
    %25 = vector.broadcast %9 : vector<1x64xf32> to vector<128x64xf32>
    %26 = arith.addf %24, %25 : vector<128x64xf32>
    %cst_28 = arith.constant dense<0.000000e+00> : vector<128xf32>
    %27 = vector.multi_reduction <add>, %26, %cst_28 [1] : vector<128x64xf32> to vector<128xf32>
    %28 = vector.shape_cast %27 : vector<128xf32> to vector<128x1xf32>
    %cst_29 = arith.constant 6.400000e+01 : f32
    %29 = vector.broadcast %cst_29 : f32 to vector<128x1xf32>
    %30 = arith.divf %28, %29 : vector<128x1xf32>
    %31 = vector.broadcast %30 : vector<128x1xf32> to vector<128x64xf32>
    %32 = arith.subf %26, %31 : vector<128x64xf32>
    %33 = arith.mulf %32, %32 : vector<128x64xf32>
    %cst_30 = arith.constant dense<0.000000e+00> : vector<128xf32>
    %34 = vector.multi_reduction <add>, %33, %cst_30 [1] : vector<128x64xf32> to vector<128xf32>
    %35 = vector.shape_cast %34 : vector<128xf32> to vector<128x1xf32>
    %cst_31 = arith.constant 6.400000e+01 : f32
    %36 = vector.broadcast %cst_31 : f32 to vector<128x1xf32>
    %37 = arith.divf %35, %36 : vector<128x1xf32>
    %cst_32 = arith.constant 9.99999974E-6 : f32
    %38 = vector.broadcast %cst_32 : f32 to vector<128x1xf32>
    %39 = arith.addf %37, %38 : vector<128x1xf32>
    %40 = math.rsqrt %39 : vector<128x1xf32>
    %41 = vector.broadcast %40 : vector<128x1xf32> to vector<128x64xf32>
    %42 = arith.mulf %32, %41 : vector<128x64xf32>
    %43 = vector.broadcast %11 : vector<1x64xf32> to vector<128x64xf32>
    %44 = arith.mulf %42, %43 : vector<128x64xf32>
    %45 = vector.broadcast %13 : vector<1x64xf32> to vector<128x64xf32>
    %46 = arith.addf %44, %45 : vector<128x64xf32>
    %cst_33 = arith.constant 0.000000e+00 : f32
    %47 = vector.broadcast %cst_33 : f32 to vector<128x64xf32>
    %48 = arith.maximumf %46, %47 : vector<128x64xf32>
    %cst_34 = arith.constant dense<0.000000e+00> : vector<128x32xf32>
    %49 = tpu.matmul %48, %5, %cst_34 {dimension_numbers = #tpu.dot_dimension_numbers<[1], [0], [0], [1], [0, 0, 1, 1], [], []>} : vector<128x64xf32>, vector<64x32xf32>, vector<128x32xf32> -> vector<128x32xf32>
    %50 = vector.broadcast %15 : vector<1x32xf32> to vector<128x32xf32>
    %51 = arith.addf %49, %50 : vector<128x32xf32>
    %cst_35 = arith.constant dense<0.000000e+00> : vector<128xf32>
    %52 = vector.multi_reduction <add>, %51, %cst_35 [1] : vector<128x32xf32> to vector<128xf32>
    %53 = vector.shape_cast %52 : vector<128xf32> to vector<128x1xf32>
    %cst_36 = arith.constant 3.200000e+01 : f32
    %54 = vector.broadcast %cst_36 : f32 to vector<128x1xf32>
    %55 = arith.divf %53, %54 : vector<128x1xf32>
    %56 = vector.broadcast %55 : vector<128x1xf32> to vector<128x32xf32>
    %57 = arith.subf %51, %56 : vector<128x32xf32>
    %58 = arith.mulf %57, %57 : vector<128x32xf32>
    %cst_37 = arith.constant dense<0.000000e+00> : vector<128xf32>
    %59 = vector.multi_reduction <add>, %58, %cst_37 [1] : vector<128x32xf32> to vector<128xf32>
    %60 = vector.shape_cast %59 : vector<128xf32> to vector<128x1xf32>
    %cst_38 = arith.constant 3.200000e+01 : f32
    %61 = vector.broadcast %cst_38 : f32 to vector<128x1xf32>
    %62 = arith.divf %60, %61 : vector<128x1xf32>
    %cst_39 = arith.constant 9.99999974E-6 : f32
    %63 = vector.broadcast %cst_39 : f32 to vector<128x1xf32>
    %64 = arith.addf %62, %63 : vector<128x1xf32>
    %65 = math.rsqrt %64 : vector<128x1xf32>
    %66 = vector.broadcast %65 : vector<128x1xf32> to vector<128x32xf32>
    %67 = arith.mulf %57, %66 : vector<128x32xf32>
    %68 = vector.broadcast %17 : vector<1x32xf32> to vector<128x32xf32>
    %69 = arith.mulf %67, %68 : vector<128x32xf32>
    %70 = vector.broadcast %19 : vector<1x32xf32> to vector<128x32xf32>
    %71 = arith.addf %69, %70 : vector<128x32xf32>
    %cst_40 = arith.constant dense<0.000000e+00> : vector<128x32xf32>
    %72 = tpu.matmul %1, %7, %cst_40 {dimension_numbers = #tpu.dot_dimension_numbers<[1], [0], [0], [1], [0, 0, 1, 1], [], []>} : vector<128x4xf32>, vector<4x32xf32>, vector<128x32xf32> -> vector<128x32xf32>
    %73 = vector.broadcast %21 : vector<1x32xf32> to vector<128x32xf32>
    %74 = arith.addf %72, %73 : vector<128x32xf32>
    %cst_41 = arith.constant 0.000000e+00 : f32
    %75 = vector.broadcast %cst_41 : f32 to vector<128x32xf32>
    %76 = arith.maximumf %74, %75 : vector<128x32xf32>
    %77 = arith.addf %71, %76 : vector<128x32xf32>
    %cst_42 = arith.constant 0.000000e+00 : f32
    %78 = vector.broadcast %cst_42 : f32 to vector<128x32xf32>
    %79 = arith.maximumf %77, %78 : vector<128x32xf32>
    %cst_43 = arith.constant dense<0.000000e+00> : vector<8x128xf32>
    %80 = tpu.matmul %23, %79, %cst_43 {dimension_numbers = #tpu.dot_dimension_numbers<[1], [1], [0], [0], [0, 0, 1, 0], [], []>} : vector<8x32xf32>, vector<128x32xf32>, vector<8x128xf32> -> vector<8x128xf32>
    %81 = arith.index_cast %arg0 : i32 to index
    %82 = memref.load %arg6[%81] : memref<2xf32, #tpu.memory_space<smem>>
    %83 = vector.broadcast %82 : f32 to vector<8x128xf32>
    %84 = arith.addf %80, %83 : vector<8x128xf32>
    %c0_44 = arith.constant 0 : index
    %c0_45 = arith.constant 0 : index
    %c0_46 = arith.constant 0 : index
    %85 = vector.load %arg7[%c0_44, %c0_45, %c0_46] : memref<1x8x128xf32, #tpu.memory_space<vmem>>, vector<1x8x128xf32>
    %86 = vector.shape_cast %85 : vector<1x8x128xf32> to vector<8x128xf32>
    %87 = vector.shape_cast %84 : vector<8x128xf32> to vector<1x8x128xf32>
    tpu.vector_store %arg7[%c0_44, %c0_45, %c0_46], %87 {strides = array<i32>} : memref<1x8x128xf32, #tpu.memory_space<vmem>>, vector<1x8x128xf32>,
    return
  }
  func.func @transform_0(%arg0: i32, %arg1: i32) -> (i32, i32) {
    %c0_i32 = arith.constant 0 : i32
    %c0_i32_0 = arith.constant 0 : i32
    return %arg1, %c0_i32 : i32, i32
  }
  func.func @transform_1(%arg0: i32, %arg1: i32) -> (i32, i32) {
    %c0_i32 = arith.constant 0 : i32
    %c0_i32_0 = arith.constant 0 : i32
    return %arg1, %c0_i32 : i32, i32
  }
  func.func @transform_2(%arg0: i32, %arg1: i32) -> (i32, i32, i32) {
    %c0_i32 = arith.constant 0 : i32
    %c0_i32_0 = arith.constant 0 : i32
    %c0_i32_1 = arith.constant 0 : i32
    return %arg0, %c0_i32, %c0_i32_0 : i32, i32, i32
  }
  func.func @transform_3(%arg0: i32, %arg1: i32) -> (i32, i32, i32) {
    %c0_i32 = arith.constant 0 : i32
    %c0_i32_0 = arith.constant 0 : i32
    %c0_i32_1 = arith.constant 0 : i32
    return %arg0, %c0_i32, %c0_i32_0 : i32, i32, i32
  }
  func.func @transform_4(%arg0: i32, %arg1: i32) -> i32 {
    %c0_i32 = arith.constant 0 : i32
    %c0_i32_0 = arith.constant 0 : i32
    return %c0_i32 : i32
  }
  func.func @transform_5(%arg0: i32, %arg1: i32) -> (i32, i32, i32) {
    %c1_i32 = arith.constant 1 : i32
    %0 = arith.muli %arg0, %c1_i32 : i32
    %1 = arith.addi %0, %arg1 : i32
    %c0_i32 = arith.constant 0 : i32
    %c0_i32_0 = arith.constant 0 : i32
    %c0_i32_1 = arith.constant 0 : i32
    return %1, %c0_i32, %c0_i32_0 : i32, i32, i32
  }
}

</mosaic_0001>

<llo_original>
// kernel: tpu_custom_call.1
$region0: #{tpu_custom_call.1}
  #allocation0 [shape = 'u32[]', space=smem, size = 0x4, offset = 0x4, fixed_abs, tag = 'smem constant byte address 0x4 - core index']
  #allocation1 [shape = 'u32[144,128]{1,0:T(1,128)}', space=vmem, size = 0x12000, scoped, tag = 'internal scratch']
  %s0 = inlined_call_operand.vmem [shape: f32[128,16], index: 0, kind: input, shape index: {}]
  %s1 = inlined_call_operand.vmem [shape: f32[128,4], index: 1, kind: input, shape index: {}]
  %s2 = inlined_call_operand.vmem [shape: f32[2,88,64], index: 2, kind: input, shape index: {}]
  %s3 = inlined_call_operand.vmem [shape: f32[2,64,64], index: 3, kind: input, shape index: {}]
  %s4 = inlined_call_operand.vmem [shape: f32[2], index: 4, kind: input, shape index: {}]
  %s5 = inlined_call_operand.hbm [shape: f32[2,8,128], index: 5, kind: output, shape index: {}]
  %s6 = sld [smem:[#allocation0]]
  $region57: #{tpu_custom_call.1} parent=0
    _
  %s8 = ssub.s32 1, %s6
  %s9 = scalar_select 0, %s8, %s6
  $region1: #{tpu_custom_call.1} parent=0
    #allocation2 [shape = 'u8[512]{0}', space=smem, size = 0x200, scoped, tag = 'input window, operand 4, single buffered']
    #allocation3 [shape = 's32[2]{0}', space=sflag, size = 0x8, scoped, tag = 'scoped memory for tpu_custom_call.1']
    #allocation4 [shape = 's32[2]{0}', space=sflag, size = 0x8, scoped, tag = 'scoped memory for tpu_custom_call.1']
    #allocation5 [shape = 'u8[8192]{0}', space=vmem, size = 0x2000, scoped, tag = 'output window, operand 0']
    %10 = vsyncpa [#allocation4], 0
    %11 = vsyncpa [#allocation3], 0
    %s12 = scalar_lea.sflag [#allocation3], 1
    %13 = vsyncpa %s12, 0
    loop: start=0, step=1, limit=4
    $region2: #{tpu_custom_call.1} parent=1 // loop_pre_header
      _
    $region3: #{tpu_custom_call.1} parent=1 // loop_header
      %s15 = sphi 0, %s19
      %p16 = scmp.ge.s32.totalorder %s15, 4
      %s22 = sphi 0, %s34
      %s23 = sphi 0, %s30
      %s24 = sphi 0, %s22
      %s25 = sphi 0, %s23
      %s26 = sphi 0, %s24
      %s27 = sphi 0, %s25
      %s37 = sphi 0, %s39
      %s40 = sphi 0, %s37
      %s41 = sphi 0, %s40
      %s57 = sphi 0, %s41
      %s63 = sphi 0, %s65
      %s66 = sphi 0, %s63
      %s67 = sphi 0, %s66
      %s83 = sphi 0, %s67
      %s89 = sphi 0, %s91
      %s92 = sphi 0, %s89
      %s93 = sphi 0, %s92
      %s109 = sphi 0, %s93
      %s115 = sphi 0, %s117
      %s118 = sphi 0, %s115
      %s119 = sphi 0, %s118
      %s135 = sphi 0, %s119
      %s139 = sphi 0, %s139
      %s141 = sphi 0, %s139
      %s142 = sphi 0, %s141
      %s156 = sphi 0, %s142
      %s164 = sphi 0, %s166
      %s167 = sphi 0, %s164
      %s168 = sphi 0, %s167
      %s184 = sphi 0, %s168
    $region4: #{tpu_custom_call.1} parent=1 // loop_header_branch
      %18 = sbr.rel (%p16) target = $region8
    $region5: #{tpu_custom_call.1} parent=1 // loop_body
      %s20 = ssub.s32 %s15, 1
      %s21 = ssub.s32 %s15, 2
      %s28 = sadd.s32 1, %s23
      %p29 = scmp.ge.s32.totalorder %s28, 1
      %s30 = scalar_select %p29, 0, %s28
      %s31 = sadd.s32 1, %s22
      %s32 = scalar_select %p29, %s31, %s22
      %p33 = scmp.ge.s32.totalorder %s32, 2
      %s34 = scalar_select %p33, 0, %s32
      %s35 = ssub.s32 %s23, %s30
      %p36 = scmp.eq.s32.totalorder %s35, 0
      %s38 = sadd.s32 %s37, 1
      %s39 = scalar_select %p36, %s37, %s38
      %p42 = pneg %p36
      %p43 = scmp.eq.s32.totalorder %s15, 1
      %p44 = por %p42, %p43
      %p45 = scmp.ne.s32.totalorder %s37, %s40
      %p46 = scmp.eq.s32.totalorder %s15, 0
      %p47 = por %p45, %p46
      %p48 = scmp.ne.s32.totalorder %s37, %s40
      %p49 = scmp.eq.s32.totalorder %s20, 1
      %p50 = por %p48, %p49
      %p51 = scmp.ne.s32.totalorder %s40, %s41
      %p52 = scmp.eq.s32.totalorder %s20, 0
      %p53 = por %p51, %p52
      %p54 = scmp.ne.s32.totalorder %s40, %s41
      %p55 = scmp.eq.s32.totalorder %s21, 1
      %p56 = por %p54, %p55
      %p58 = scmp.ne.s32.totalorder %s41, %s57
      %p59 = scmp.eq.s32.totalorder %s21, 0
      %p60 = por %p58, %p59
      %s61 = ssub.s32 %s23, %s30
      %p62 = scmp.eq.s32.totalorder %s61, 0
      %s64 = sadd.s32 %s63, 1
      %s65 = scalar_select %p62, %s63, %s64
      %p68 = pneg %p62
      %p69 = scmp.eq.s32.totalorder %s15, 1
      %p70 = por %p68, %p69
      %p71 = scmp.ne.s32.totalorder %s63, %s66
      %p72 = scmp.eq.s32.totalorder %s15, 0
      %p73 = por %p71, %p72
      %p74 = scmp.ne.s32.totalorder %s63, %s66
      %p75 = scmp.eq.s32.totalorder %s20, 1
      %p76 = por %p74, %p75
      %p77 = scmp.ne.s32.totalorder %s66, %s67
      %p78 = scmp.eq.s32.totalorder %s20, 0
      %p79 = por %p77, %p78
      %p80 = scmp.ne.s32.totalorder %s66, %s67
      %p81 = scmp.eq.s32.totalorder %s21, 1
      %p82 = por %p80, %p81
      %p84 = scmp.ne.s32.totalorder %s67, %s83
      %p85 = scmp.eq.s32.totalorder %s21, 0
      %p86 = por %p84, %p85
      %s87 = ssub.s32 %s22, %s34
      %p88 = scmp.eq.s32.totalorder %s87, 0
      %s90 = sadd.s32 %s89, 1
      %s91 = scalar_select %p88, %s89, %s90
      %p94 = pneg %p88
      %p95 = scmp.eq.s32.totalorder %s15, 1
      %p96 = por %p94, %p95
      %p97 = scmp.ne.s32.totalorder %s89, %s92
      %p98 = scmp.eq.s32.totalorder %s15, 0
      %p99 = por %p97, %p98
      %p100 = scmp.ne.s32.totalorder %s89, %s92
      %p101 = scmp.eq.s32.totalorder %s20, 1
      %p102 = por %p100, %p101
      %p103 = scmp.ne.s32.totalorder %s92, %s93
      %p104 = scmp.eq.s32.totalorder %s20, 0
      %p105 = por %p103, %p104
      %p106 = scmp.ne.s32.totalorder %s92, %s93
      %p107 = scmp.eq.s32.totalorder %s21, 1
      %p108 = por %p106, %p107
      %p110 = scmp.ne.s32.totalorder %s93, %s109
      %p111 = scmp.eq.s32.totalorder %s21, 0
      %p112 = por %p110, %p111
      %s113 = ssub.s32 %s22, %s34
      %p114 = scmp.eq.s32.totalorder %s113, 0
      %s116 = sadd.s32 %s115, 1
      %s117 = scalar_select %p114, %s115, %s116
      %p120 = pneg %p114
      %p121 = scmp.eq.s32.totalorder %s15, 1
      %p122 = por %p120, %p121
      %p123 = scmp.ne.s32.totalorder %s115, %s118
      %p124 = scmp.eq.s32.totalorder %s15, 0
      %p125 = por %p123, %p124
      %p126 = scmp.ne.s32.totalorder %s115, %s118
      %p127 = scmp.eq.s32.totalorder %s20, 1
      %p128 = por %p126, %p127
      %p129 = scmp.ne.s32.totalorder %s118, %s119
      %p130 = scmp.eq.s32.totalorder %s20, 0
      %p131 = por %p129, %p130
      %p132 = scmp.ne.s32.totalorder %s118, %s119
      %p133 = scmp.eq.s32.totalorder %s21, 1
      %p134 = por %p132, %p133
      %p136 = scmp.ne.s32.totalorder %s119, %s135
      %p137 = scmp.eq.s32.totalorder %s21, 0
      %p138 = por %p136, %p137
      %s140 = sadd.s32 %s139, 1
      %p143 = scmp.eq.s32.totalorder %s15, 1
      %p144 = scmp.ne.s32.totalorder %s139, %s141
      %p145 = scmp.eq.s32.totalorder %s15, 0
      %p146 = por %p144, %p145
      %p147 = scmp.ne.s32.totalorder %s139, %s141
      %p148 = scmp.eq.s32.totalorder %s20, 1
      %p149 = por %p147, %p148
      %p150 = scmp.ne.s32.totalorder %s141, %s142
      %p151 = scmp.eq.s32.totalorder %s20, 0
      %p152 = por %p150, %p151
      %p153 = scmp.ne.s32.totalorder %s141, %s142
      %p154 = scmp.eq.s32.totalorder %s21, 1
      %p155 = por %p153, %p154
      %p157 = scmp.ne.s32.totalorder %s142, %s156
      %p158 = scmp.eq.s32.totalorder %s21, 0
      %p159 = por %p157, %p158
      %s160 = sadd.s32 %s22, %s23
      %s161 = sadd.s32 %s34, %s30
      %s162 = ssub.s32 %s160, %s161
      %p163 = scmp.eq.s32.totalorder %s162, 0
      %s165 = sadd.s32 %s164, 1
      %s166 = scalar_select %p163, %s164, %s165
      %p169 = pneg %p163
      %p170 = scmp.eq.s32.totalorder %s15, 1
      %p171 = por %p169, %p170
      %p172 = scmp.ne.s32.totalorder %s164, %s167
      %p173 = scmp.eq.s32.totalorder %s15, 0
      %p174 = por %p172, %p173
      %p175 = scmp.ne.s32.totalorder %s164, %s167
      %p176 = scmp.eq.s32.totalorder %s20, 1
      %p177 = por %p175, %p176
      %p178 = scmp.ne.s32.totalorder %s167, %s168
      %p179 = scmp.eq.s32.totalorder %s20, 0
      %p180 = por %p178, %p179
      %p181 = scmp.ne.s32.totalorder %s167, %s168
      %p182 = scmp.eq.s32.totalorder %s21, 1
      %p183 = por %p181, %p182
      %p185 = scmp.ne.s32.totalorder %s168, %s184
      %p186 = scmp.eq.s32.totalorder %s21, 0
      %p187 = por %p185, %p186
      %p188 = scmp.le.s32.totalorder 1, %s15
      %p189 = scmp.lt.s32.totalorder %s15, 3
      %p190 = pnand %p188, %p189
      %p191 = pneg %p190
      // Predicated region
      $region9: #{tpu_custom_call.1} parent=5 // pred_check
        _
      $region10: #{tpu_custom_call.1} parent=5 // pred_check_branch
        %193 = sbr.rel (%p190) target = $region12
      $region11: #{tpu_custom_call.1} parent=5 // pred_region
        %s194 = ssub.s32 %s15, 1
        // Predicated region
        $region13: #{tpu_custom_call.1} parent=11 // pred_check
          %p195 = pneg %p53
        $region14: #{tpu_custom_call.1} parent=11 // pred_check_branch
          %197 = sbr.rel (%p195) target = $region16
        $region15: #{tpu_custom_call.1} parent=11 // pred_region
          %s198 = smul.u32 16, %s25
          %p199 = scmp.lt.s32.totalorder %s198, 15
          %s200 = scalar_select %p199, %s198, 15
          %s201 = smul.addr %s200, 8
          %s202 = scalar_lea.vmem %s0, %s201
          %s203 = smul.u32 16, %s25
        $region16: #{tpu_custom_call.1} parent=11 // pred_fallthru
          _
        // Predicated region
        $region17: #{tpu_custom_call.1} parent=11 // pred_check
          %p204 = pneg %p79
        $region18: #{tpu_custom_call.1} parent=11 // pred_check_branch
          %206 = sbr.rel (%p204) target = $region20
        $region19: #{tpu_custom_call.1} parent=11 // pred_region
          %s207 = smul.u32 16, %s25
          %p208 = scmp.lt.s32.totalorder %s207, 15
          %s209 = scalar_select %p208, %s207, 15
          %s210 = smul.addr %s209, 8
          %s211 = scalar_lea.vmem %s1, %s210
          %s212 = smul.u32 16, %s25
        $region20: #{tpu_custom_call.1} parent=11 // pred_fallthru
          _
        // Predicated region
        $region21: #{tpu_custom_call.1} parent=11 // pred_check
          %p213 = pneg %p152
        $region22: #{tpu_custom_call.1} parent=11 // pred_check_branch
          %215 = sbr.rel (%p213) target = $region24
        $region23: #{tpu_custom_call.1} parent=11 // pred_region
          %s217 = ssub.s32 16, 16
          %218 = vsyncadd [#allocation4], %s217
          %s220 = sshll.u32 %s4, 4
          %s221 = int_to_ptr.vmem [resolvable:$true] %s220
          %223 = dma.vmem_to_smem %s221, 16, [#allocation2], [#allocation4]
        $region24: #{tpu_custom_call.1} parent=11 // pred_fallthru
          _
      $region12: #{tpu_custom_call.1} parent=5 // pred_fallthru
        _
      %p224 = scmp.lt.s32.totalorder %s15, 2
      // Predicated region
      $region25: #{tpu_custom_call.1} parent=5 // pred_check
        %p225 = pneg %p224
      $region26: #{tpu_custom_call.1} parent=5 // pred_check_branch
        %227 = sbr.rel (%p225) target = $region28
      $region27: #{tpu_custom_call.1} parent=5 // pred_region
        // Predicated region
        $region29: #{tpu_custom_call.1} parent=27 // pred_check
          %p228 = pneg %p99
        $region30: #{tpu_custom_call.1} parent=27 // pred_check_branch
          %230 = sbr.rel (%p228) target = $region32
        $region31: #{tpu_custom_call.1} parent=27 // pred_region
          %p231 = scmp.lt.s32.totalorder %s22, 1
          %s232 = scalar_select %p231, %s22, 1
          %s233 = smul.addr %s232, 11
          %s234 = smul.addr %s233, 8
          %s235 = scalar_lea.vmem %s2, %s234
        $region32: #{tpu_custom_call.1} parent=27 // pred_fallthru
          _
        // Predicated region
        $region33: #{tpu_custom_call.1} parent=27 // pred_check
          %p236 = pneg %p125
        $region34: #{tpu_custom_call.1} parent=27 // pred_check_branch
          %238 = sbr.rel (%p236) target = $region36
        $region35: #{tpu_custom_call.1} parent=27 // pred_region
          %p239 = scmp.lt.s32.totalorder %s22, 1
          %s240 = scalar_select %p239, %s22, 1
          %s241 = smul.addr %s240, 8
          %s242 = smul.addr %s241, 8
          %s243 = scalar_lea.vmem %s3, %s242
        $region36: #{tpu_custom_call.1} parent=27 // pred_fallthru
          _
      $region28: #{tpu_custom_call.1} parent=5 // pred_fallthru
        _
      %p244 = scmp.le.s32.totalorder 1, %s15
      %p245 = scmp.lt.s32.totalorder %s15, 3
      %p246 = pnand %p244, %p245
      %p247 = pneg %p246
      // Predicated region
      $region37: #{tpu_custom_call.1} parent=5 // pred_check
        _
      $region38: #{tpu_custom_call.1} parent=5 // pred_check_branch
        %249 = sbr.rel (%p246) target = $region40
      $region39: #{tpu_custom_call.1} parent=5 // pred_region
        %s250 = ssub.s32 %s15, 1
        // Predicated region
        $region41: #{tpu_custom_call.1} parent=39 // pred_check
          %p251 = pneg %p152
        $region42: #{tpu_custom_call.1} parent=39 // pred_check_branch
          %253 = sbr.rel (%p251) target = $region44
        $region43: #{tpu_custom_call.1} parent=39 // pred_region
          %254 = dma.done [#allocation4], 16
        $region44: #{tpu_custom_call.1} parent=39 // pred_fallthru
          _
        %255 = sfence
        %s256 = smul.u32 16, %s25
        %p257 = scmp.lt.s32.totalorder %s256, 15
        %s258 = scalar_select %p257, %s256, 15
        %s259 = smul.addr %s258, 8
        %s260 = scalar_lea.vmem %s0, %s259
        %p261 = pneg %p53
        %p262 = pneg %p50
        %s263 = smul.u32 16, %s25
        %p264 = scmp.lt.s32.totalorder %s263, 15
        %s265 = scalar_select %p264, %s263, 15
        %s266 = smul.addr %s265, 8
        %s267 = scalar_lea.vmem %s1, %s266
        %p268 = pneg %p79
        %p269 = pneg %p76
        %p270 = scmp.lt.s32.totalorder %s24, 1
        %s271 = scalar_select %p270, %s24, 1
        %s272 = smul.addr %s271, 11
        %s273 = smul.addr %s272, 8
        %s274 = scalar_lea.vmem %s2, %s273
        %p275 = pneg %p105
        %p276 = pneg %p102
        %p277 = scmp.lt.s32.totalorder %s24, 1
        %s278 = scalar_select %p277, %s24, 1
        %s279 = smul.addr %s278, 8
        %s280 = smul.addr %s279, 8
        %s281 = scalar_lea.vmem %s3, %s280
        %p282 = pneg %p131
        %p283 = pneg %p128
        %p284 = pneg %p152
        %p285 = pneg %p149
        %p286 = pneg %p180
        %p287 = pneg %p177
        %s288 = sand.u32 %s167, 1
        %s289 = scalar_lea.sflag [#allocation3], %s288
        %s290 = sand.u32 %s167, 1
        %s291 = smul.addr %s290, 8
        %s292 = scalar_lea.vmem [#allocation5], %s291
        %s293 = smul.u32 16, %s25
        %p294 = scmp.lt.s32.totalorder %s293, 15
        %s295 = scalar_select %p294, %s293, 15
        %s296 = smul.addr %s295, 8
        %s297 = scalar_lea.vmem %s0, %s296
        %s298 = smul.u32 16, %s25
        %s299 = smul.u32 16, %s25
        %p300 = scmp.lt.s32.totalorder %s299, 15
        %s301 = scalar_select %p300, %s299, 15
        %s302 = smul.addr %s301, 8
        %s303 = scalar_lea.vmem %s1, %s302
        %s304 = smul.u32 16, %s25
        %p305 = scmp.lt.s32.totalorder %s24, 1
        %s306 = scalar_select %p305, %s24, 1
        %s307 = smul.addr %s306, 11
        %s308 = smul.addr %s307, 8
        %s309 = scalar_lea.vmem %s2, %s308
        %p310 = scmp.lt.s32.totalorder %s24, 1
        %s311 = scalar_select %p310, %s24, 1
        %s312 = smul.addr %s311, 8
        %s313 = smul.addr %s312, 8
        %s314 = scalar_lea.vmem %s3, %s313
        %s315 = sadd.s32 %s24, %s25
        %v316 = vld [vmem:[%s297] sm:$0xff]
        %v317 = vld [vmem:[%s297 + $0x8] sm:$0xff]
        %v318 = vld [vmem:[%s297 + $0x10] sm:$0xff]
        %v319 = vld [vmem:[%s297 + $0x18] sm:$0xff]
        %v320 = vld [vmem:[%s297 + $0x20] sm:$0xff]
        %v321 = vld [vmem:[%s297 + $0x28] sm:$0xff]
        %v322 = vld [vmem:[%s297 + $0x30] sm:$0xff]
        %v323 = vld [vmem:[%s297 + $0x38] sm:$0xff]
        %v324 = vld [vmem:[%s297 + $0x40] sm:$0xff]
        %v325 = vld [vmem:[%s297 + $0x48] sm:$0xff]
        %v326 = vld [vmem:[%s297 + $0x50] sm:$0xff]
        %v327 = vld [vmem:[%s297 + $0x58] sm:$0xff]
        %v328 = vld [vmem:[%s297 + $0x60] sm:$0xff]
        %v329 = vld [vmem:[%s297 + $0x68] sm:$0xff]
        %v330 = vld [vmem:[%s297 + $0x70] sm:$0xff]
        %v331 = vld [vmem:[%s297 + $0x78] sm:$0xff]
        %v332 = vld [vmem:[%s303] sm:$0xff]
        %v333 = vld [vmem:[%s303 + $0x8] sm:$0xff]
        %v334 = vld [vmem:[%s303 + $0x10] sm:$0xff]
        %v335 = vld [vmem:[%s303 + $0x18] sm:$0xff]
        %v336 = vld [vmem:[%s303 + $0x20] sm:$0xff]
        %v337 = vld [vmem:[%s303 + $0x28] sm:$0xff]
        %v338 = vld [vmem:[%s303 + $0x30] sm:$0xff]
        %v339 = vld [vmem:[%s303 + $0x38] sm:$0xff]
        %v340 = vld [vmem:[%s303 + $0x40] sm:$0xff]
        %v341 = vld [vmem:[%s303 + $0x48] sm:$0xff]
        %v342 = vld [vmem:[%s303 + $0x50] sm:$0xff]
        %v343 = vld [vmem:[%s303 + $0x58] sm:$0xff]
        %v344 = vld [vmem:[%s303 + $0x60] sm:$0xff]
        %v345 = vld [vmem:[%s303 + $0x68] sm:$0xff]
        %v346 = vld [vmem:[%s303 + $0x70] sm:$0xff]
        %v347 = vld [vmem:[%s303 + $0x78] sm:$0xff]
        %v348 = vld [vmem:[%s309] sm:$0xff]
        %v349 = vld [vmem:[%s309 + $0x8] sm:$0xff]
        %v350 = vld [vmem:[%s309 + $0x10] sm:$0xff]
        %v351 = vld [vmem:[%s309 + $0x18] sm:$0xff]
        %v352 = vld [vmem:[%s309 + $0x20] sm:$0xff]
        %v353 = vld [vmem:[%s309 + $0x28] sm:$0xff]
        %v354 = vld [vmem:[%s309 + $0x30] sm:$0xff]
        %v355 = vld [vmem:[%s309 + $0x38] sm:$0xff]
        %v356 = vld [vmem:[%s309 + $0x40] sm:$0xff]
        %v357 = vld [vmem:[%s309 + $0x48] sm:$0xff]
        %v358 = vld [vmem:[%s309 + $0x50] sm:$0xf]
        %v359 = vld [vmem:[%s314] sm:$0x1]
        %v360 = vld [vmem:[%s314 + $0x8] sm:$0x1]
        %v361 = vld [vmem:[%s314 + $0x10] sm:$0x1]
        %v362 = vld [vmem:[%s314 + $0x18] sm:$0x1]
        %v363 = vld [vmem:[%s314 + $0x20] sm:$0x1]
        %v364 = vld [vmem:[%s314 + $0x28] sm:$0x1]
        %v365 = vld [vmem:[%s314 + $0x30] sm:$0x1]
        %v366 = vld [vmem:[%s314 + $0x38] sm:$0xff]
        %v367 = vlaneseq
        %v368 = vshrl.u32 %v367, 7
        %v369 = vsub.s32 0, %v368
        %v370 = vrot.slane %v359, %v369
        %vm371 = vcmask 130048
        %v373 = vsel %vm371, %v316, 0
        %v376 = vsel %vm371, %v317, 0
        %v379 = vsel %vm371, %v318, 0
        %v382 = vsel %vm371, %v319, 0
        %v385 = vsel %vm371, %v320, 0
        %v388 = vsel %vm371, %v321, 0
        %v391 = vsel %vm371, %v322, 0
        %v394 = vsel %vm371, %v323, 0
        %v397 = vsel %vm371, %v324, 0
        %v400 = vsel %vm371, %v325, 0
        %v403 = vsel %vm371, %v326, 0
        %v406 = vsel %vm371, %v327, 0
        %v409 = vsel %vm371, %v328, 0
        %v412 = vsel %vm371, %v329, 0
        %v415 = vsel %vm371, %v330, 0
        %v418 = vsel %vm371, %v331, 0
        %420 = vmatprep.subr.mxu0 0.0
        %421 = vmatpush1.msra.mxu0 %v348
        %422 = vmatprep.subr.mxu0 0.0
        %423 = vmatpush1.msra.mxu0 %v349
        %424 = vmatprep.subr.mxu0 0.0
        %425 = vmatpush1.msra.mxu0 0.0
        %426 = vmatprep.subr.mxu0 0.0
        %427 = vmatpush1.msra.mxu0 0.0
        %428 = vmatprep.subr.mxu0 0.0
        %429 = vmatpush1.msra.mxu0 0.0
        %430 = vmatprep.subr.mxu0 0.0
        %431 = vmatpush1.msra.mxu0 0.0
        %432 = vmatprep.subr.mxu0 0.0
        %433 = vmatpush1.msra.mxu0 0.0
        %434 = vmatprep.subr.mxu0 0.0
        %435 = vmatpush1.msra.mxu0 0.0
        %436 = vmatprep.subr.mxu0 0.0
        %437 = vmatpush1.msra.mxu0 0.0
        %438 = vmatprep.subr.mxu0 0.0
        %439 = vmatpush1.msra.mxu0 0.0
        %440 = vmatprep.subr.mxu0 0.0
        %441 = vmatpush1.msra.mxu0 0.0
        %442 = vmatprep.subr.mxu0 0.0
        %443 = vmatpush1.msra.mxu0 0.0
        %444 = vmatprep.subr.mxu0 0.0
        %445 = vmatpush1.msra.mxu0 0.0
        %446 = vmatprep.subr.mxu0 0.0
        %447 = vmatpush1.msra.mxu0 0.0
        %448 = vmatprep.subr.mxu0 0.0
        %449 = vmatpush1.msra.mxu0 0.0
        %450 = vmatprep.subr.mxu0 0.0
        %451 = vmatpush1.msra.mxu0 0.0
        %452 = vmatprep.subr.mxu0 0.0
        %453 = vmatpush1.msra.mxu0 0.0
        %454 = vmatprep.subr.mxu0 0.0
        %455 = vmatpush1.msra.mxu0 0.0
        %456 = vmatprep.subr.mxu0 0.0
        %457 = vmatpush1.msra.mxu0 0.0
        %458 = vmatprep.subr.mxu0 0.0
        %459 = vmatpush1.msra.mxu0 0.0
        %460 = vmatprep.subr.mxu0 0.0
        %461 = vmatpush1.msra.mxu0 0.0
        %462 = vmatprep.subr.mxu0 0.0
        %463 = vmatpush1.msra.mxu0 0.0
        %464 = vmatprep.subr.mxu0 0.0
        %465 = vmatpush1.msra.mxu0 0.0
        %466 = vmatprep.subr.mxu0 0.0
        %467 = vmatpush1.msra.mxu0 0.0
        %468 = vmatprep.subr.mxu0 0.0
        %469 = vmatpush1.msra.mxu0 0.0
        %470 = vmatprep.subr.mxu0 0.0
        %471 = vmatpush1.msra.mxu0 0.0
        %472 = vmatprep.subr.mxu0 0.0
        %473 = vmatpush1.msra.mxu0 0.0
        %474 = vmatprep.subr.mxu0 0.0
        %475 = vmatpush1.msra.mxu0 0.0
        %476 = vmatprep.subr.mxu0 0.0
        %477 = vmatpush1.msra.mxu0 0.0
        %478 = vmatprep.subr.mxu0 0.0
        %479 = vmatpush1.msra.mxu0 0.0
        %480 = vmatprep.subr.mxu0 0.0
        %481 = vmatpush1.msra.mxu0 0.0
        %482 = vmatprep.subr.mxu0 0.0
        %483 = vmatpush1.msra.mxu0 0.0
        %484 = vmatprep.mubr.f32.mxu0 0.0
        %485 = vmatmul.mubr.f32.gmra.mrb[0].mxu0 %v373
        %v486 = vpop.f32.mrb[0].mxu0
        %v487 = vadd.f32 %v370, %v486
        %v488 = vpop.f32.mrb[0].mxu0
        %489 = vmatprep.mubr.f32.mxu0 0.0
        %490 = vmatmul.mubr.f32.gmra.mrb[0].mxu0 %v376
        %v491 = vpop.f32.mrb[0].mxu0
        %v492 = vadd.f32 %v370, %v491
        %v493 = vpop.f32.mrb[0].mxu0
        %494 = vmatprep.mubr.f32.mxu0 0.0
        %495 = vmatmul.mubr.f32.gmra.mrb[0].mxu0 %v379
        %v496 = vpop.f32.mrb[0].mxu0
        %v497 = vadd.f32 %v370, %v496
        %v498 = vpop.f32.mrb[0].mxu0
        %499 = vmatprep.mubr.f32.mxu0 0.0
        %500 = vmatmul.mubr.f32.gmra.mrb[0].mxu0 %v382
        %v501 = vpop.f32.mrb[0].mxu0
        %v502 = vadd.f32 %v370, %v501
        %v503 = vpop.f32.mrb[0].mxu0
        %504 = vmatprep.mubr.f32.mxu0 0.0
        %505 = vmatmul.mubr.f32.gmra.mrb[0].mxu0 %v385
        %v506 = vpop.f32.mrb[0].mxu0
        %v507 = vadd.f32 %v370, %v506
        %v508 = vpop.f32.mrb[0].mxu0
        %509 = vmatprep.mubr.f32.mxu0 0.0
        %510 = vmatmul.mubr.f32.gmra.mrb[0].mxu0 %v388
        %v511 = vpop.f32.mrb[0].mxu0
        %v512 = vadd.f32 %v370, %v511
        %v513 = vpop.f32.mrb[0].mxu0
        %514 = vmatprep.mubr.f32.mxu0 0.0
        %515 = vmatmul.mubr.f32.gmra.mrb[0].mxu0 %v391
        %v516 = vpop.f32.mrb[0].mxu0
        %v517 = vadd.f32 %v370, %v516
        %v518 = vpop.f32.mrb[0].mxu0
        %519 = vmatprep.mubr.f32.mxu0 0.0
        %520 = vmatmul.mubr.f32.gmra.mrb[0].mxu0 %v394
        %v521 = vpop.f32.mrb[0].mxu0
        %v522 = vadd.f32 %v370, %v521
        %v523 = vpop.f32.mrb[0].mxu0
        %524 = vmatprep.mubr.f32.mxu0 0.0
        %525 = vmatmul.mubr.f32.gmra.mrb[0].mxu0 %v397
        %v526 = vpop.f32.mrb[0].mxu0
        %v527 = vadd.f32 %v370, %v526
        %v528 = vpop.f32.mrb[0].mxu0
        %529 = vmatprep.mubr.f32.mxu0 0.0
        %530 = vmatmul.mubr.f32.gmra.mrb[0].mxu0 %v400
        %v531 = vpop.f32.mrb[0].mxu0
        %v532 = vadd.f32 %v370, %v531
        %v533 = vpop.f32.mrb[0].mxu0
        %534 = vmatprep.mubr.f32.mxu0 0.0
        %535 = vmatmul.mubr.f32.gmra.mrb[0].mxu0 %v403
        %v536 = vpop.f32.mrb[0].mxu0
        %v537 = vadd.f32 %v370, %v536
        %v538 = vpop.f32.mrb[0].mxu0
        %539 = vmatprep.mubr.f32.mxu0 0.0
        %540 = vmatmul.mubr.f32.gmra.mrb[0].mxu0 %v406
        %v541 = vpop.f32.mrb[0].mxu0
        %v542 = vadd.f32 %v370, %v541
        %v543 = vpop.f32.mrb[0].mxu0
        %544 = vmatprep.mubr.f32.mxu0 0.0
        %545 = vmatmul.mubr.f32.gmra.mrb[0].mxu0 %v409
        %v546 = vpop.f32.mrb[0].mxu0
        %v547 = vadd.f32 %v370, %v546
        %v548 = vpop.f32.mrb[0].mxu0
        %549 = vmatprep.mubr.f32.mxu0 0.0
        %550 = vmatmul.mubr.f32.gmra.mrb[0].mxu0 %v412
        %v551 = vpop.f32.mrb[0].mxu0
        %v552 = vadd.f32 %v370, %v551
        %v553 = vpop.f32.mrb[0].mxu0
        %554 = vmatprep.mubr.f32.mxu0 0.0
        %555 = vmatmul.mubr.f32.gmra.mrb[0].mxu0 %v415
        %v556 = vpop.f32.mrb[0].mxu0
        %v557 = vadd.f32 %v370, %v556
        %v558 = vpop.f32.mrb[0].mxu0
        %559 = vmatprep.mubr.f32.mxu0 0.0
        %560 = vmatmul.mubr.f32.gmra.mrb[0].mxu0 %v418
        %v561 = vpop.f32.mrb[0].mxu0
        %v562 = vadd.f32 %v370, %v561
        %v563 = vpop.f32.mrb[0].mxu0
        %564 = vdwg.mxu0
        %vm565 = vcmask 523264
        %v566 = vsel %vm565, %v487, 0.0
        %567 = vadd.xlane.f32.xlu0 %v566
        %v568 = vpop.xlane.xlu0 %567
        %v569 = vsel %vm565, %v492, 0.0
        %570 = vadd.xlane.f32.xlu0 %v569
        %v571 = vpop.xlane.xlu0 %570
        %v572 = vsel %vm565, %v497, 0.0
        %573 = vadd.xlane.f32.xlu0 %v572
        %v574 = vpop.xlane.xlu0 %573
        %v575 = vsel %vm565, %v502, 0.0
        %576 = vadd.xlane.f32.xlu0 %v575
        %v577 = vpop.xlane.xlu0 %576
        %v578 = vsel %vm565, %v507, 0.0
        %579 = vadd.xlane.f32.xlu0 %v578
        %v580 = vpop.xlane.xlu0 %579
        %v581 = vsel %vm565, %v512, 0.0
        %582 = vadd.xlane.f32.xlu0 %v581
        %v583 = vpop.xlane.xlu0 %582
        %v584 = vsel %vm565, %v517, 0.0
        %585 = vadd.xlane.f32.xlu0 %v584
        %v586 = vpop.xlane.xlu0 %585
        %v587 = vsel %vm565, %v522, 0.0
        %588 = vadd.xlane.f32.xlu0 %v587
        %v589 = vpop.xlane.xlu0 %588
        %v590 = vsel %vm565, %v527, 0.0
        %591 = vadd.xlane.f32.xlu0 %v590
        %v592 = vpop.xlane.xlu0 %591
        %v593 = vsel %vm565, %v532, 0.0
        %594 = vadd.xlane.f32.xlu0 %v593
        %v595 = vpop.xlane.xlu0 %594
        %v596 = vsel %vm565, %v537, 0.0
        %597 = vadd.xlane.f32.xlu0 %v596
        %v598 = vpop.xlane.xlu0 %597
        %v599 = vsel %vm565, %v542, 0.0
        %600 = vadd.xlane.f32.xlu0 %v599
        %v601 = vpop.xlane.xlu0 %600
        %v602 = vsel %vm565, %v547, 0.0
        %603 = vadd.xlane.f32.xlu0 %v602
        %v604 = vpop.xlane.xlu0 %603
        %v605 = vsel %vm565, %v552, 0.0
        %606 = vadd.xlane.f32.xlu0 %v605
        %v607 = vpop.xlane.xlu0 %606
        %v608 = vsel %vm565, %v557, 0.0
        %609 = vadd.xlane.f32.xlu0 %v608
        %v610 = vpop.xlane.xlu0 %609
        %v611 = vsel %vm565, %v562, 0.0
        %612 = vadd.xlane.f32.xlu0 %v611
        %v613 = vpop.xlane.xlu0 %612
        %v614 = vrcp.pop 64.0
        %v615 = vmul.f32 %v568, %v614
        %v616 = vmul.f32 %v571, %v614
        %v617 = vmul.f32 %v574, %v614
        %v618 = vmul.f32 %v577, %v614
        %v619 = vmul.f32 %v580, %v614
        %v620 = vmul.f32 %v583, %v614
        %v621 = vmul.f32 %v586, %v614
        %v622 = vmul.f32 %v589, %v614
        %v623 = vmul.f32 %v592, %v614
        %v624 = vmul.f32 %v595, %v614
        %v625 = vmul.f32 %v598, %v614
        %v626 = vmul.f32 %v601, %v614
        %v627 = vmul.f32 %v604, %v614
        %v628 = vmul.f32 %v607, %v614
        %v629 = vmul.f32 %v610, %v614
        %v630 = vmul.f32 %v613, %v614
        %v631 = vsub.f32 %v487, %v615
        %v632 = vsub.f32 %v492, %v616
        %v633 = vsub.f32 %v497, %v617
        %v634 = vsub.f32 %v502, %v618
        %v635 = vsub.f32 %v507, %v619
        %v636 = vsub.f32 %v512, %v620
        %v637 = vsub.f32 %v517, %v621
        %v638 = vsub.f32 %v522, %v622
        %v639 = vsub.f32 %v527, %v623
        %v640 = vsub.f32 %v532, %v624
        %v641 = vsub.f32 %v537, %v625
        %v642 = vsub.f32 %v542, %v626
        %v643 = vsub.f32 %v547, %v627
        %v644 = vsub.f32 %v552, %v628
        %v645 = vsub.f32 %v557, %v629
        %v646 = vsub.f32 %v562, %v630
        %v647 = vmul.f32 %v631, %v631
        %v648 = vmul.f32 %v632, %v632
        %v649 = vmul.f32 %v633, %v633
        %v650 = vmul.f32 %v634, %v634
        %v651 = vmul.f32 %v635, %v635
        %v652 = vmul.f32 %v636, %v636
        %v653 = vmul.f32 %v637, %v637
        %v654 = vmul.f32 %v638, %v638
        %v655 = vmul.f32 %v639, %v639
        %v656 = vmul.f32 %v640, %v640
        %v657 = vmul.f32 %v641, %v641
        %v658 = vmul.f32 %v642, %v642
        %v659 = vmul.f32 %v643, %v643
        %v660 = vmul.f32 %v644, %v644
        %v661 = vmul.f32 %v645, %v645
        %v662 = vmul.f32 %v646, %v646
        %v663 = vsel %vm565, %v647, 0.0
        %664 = vadd.xlane.f32.xlu0 %v663
        %v665 = vpop.xlane.xlu0 %664
        %v666 = vsel %vm565, %v648, 0.0
        %667 = vadd.xlane.f32.xlu0 %v666
        %v668 = vpop.xlane.xlu0 %667
        %v669 = vsel %vm565, %v649, 0.0
        %670 = vadd.xlane.f32.xlu0 %v669
        %v671 = vpop.xlane.xlu0 %670
        %v672 = vsel %vm565, %v650, 0.0
        %673 = vadd.xlane.f32.xlu0 %v672
        %v674 = vpop.xlane.xlu0 %673
        %v675 = vsel %vm565, %v651, 0.0
        %676 = vadd.xlane.f32.xlu0 %v675
        %v677 = vpop.xlane.xlu0 %676
        %v678 = vsel %vm565, %v652, 0.0
        %679 = vadd.xlane.f32.xlu0 %v678
        %v680 = vpop.xlane.xlu0 %679
        %v681 = vsel %vm565, %v653, 0.0
        %682 = vadd.xlane.f32.xlu0 %v681
        %v683 = vpop.xlane.xlu0 %682
        %v684 = vsel %vm565, %v654, 0.0
        %685 = vadd.xlane.f32.xlu0 %v684
        %v686 = vpop.xlane.xlu0 %685
        %v687 = vsel %vm565, %v655, 0.0
        %688 = vadd.xlane.f32.xlu0 %v687
        %v689 = vpop.xlane.xlu0 %688
        %v690 = vsel %vm565, %v656, 0.0
        %691 = vadd.xlane.f32.xlu0 %v690
        %v692 = vpop.xlane.xlu0 %691
        %v693 = vsel %vm565, %v657, 0.0
        %694 = vadd.xlane.f32.xlu0 %v693
        %v695 = vpop.xlane.xlu0 %694
        %v696 = vsel %vm565, %v658, 0.0
        %697 = vadd.xlane.f32.xlu0 %v696
        %v698 = vpop.xlane.xlu0 %697
        %v699 = vsel %vm565, %v659, 0.0
        %700 = vadd.xlane.f32.xlu0 %v699
        %v701 = vpop.xlane.xlu0 %700
        %v702 = vsel %vm565, %v660, 0.0
        %703 = vadd.xlane.f32.xlu0 %v702
        %v704 = vpop.xlane.xlu0 %703
        %v705 = vsel %vm565, %v661, 0.0
        %706 = vadd.xlane.f32.xlu0 %v705
        %v707 = vpop.xlane.xlu0 %706
        %v708 = vsel %vm565, %v662, 0.0
        %709 = vadd.xlane.f32.xlu0 %v708
        %v710 = vpop.xlane.xlu0 %709
        %v711 = vmul.f32 %v665, %v614
        %v712 = vmul.f32 %v668, %v614
        %v713 = vmul.f32 %v671, %v614
        %v714 = vmul.f32 %v674, %v614
        %v715 = vmul.f32 %v677, %v614
        %v716 = vmul.f32 %v680, %v614
        %v717 = vmul.f32 %v683, %v614
        %v718 = vmul.f32 %v686, %v614
        %v719 = vmul.f32 %v689, %v614
        %v720 = vmul.f32 %v692, %v614
        %v721 = vmul.f32 %v695, %v614
        %v722 = vmul.f32 %v698, %v614
        %v723 = vmul.f32 %v701, %v614
        %v724 = vmul.f32 %v704, %v614
        %v725 = vmul.f32 %v707, %v614
        %v726 = vmul.f32 %v710, %v614
        %v727 = vadd.f32 %v711, 1e-05
        %v728 = vadd.f32 %v712, 1e-05
        %v729 = vadd.f32 %v713, 1e-05
        %v730 = vadd.f32 %v714, 1e-05
        %v731 = vadd.f32 %v715, 1e-05
        %v732 = vadd.f32 %v716, 1e-05
        %v733 = vadd.f32 %v717, 1e-05
        %v734 = vadd.f32 %v718, 1e-05
        %v735 = vadd.f32 %v719, 1e-05
        %v736 = vadd.f32 %v720, 1e-05
        %v737 = vadd.f32 %v721, 1e-05
        %v738 = vadd.f32 %v722, 1e-05
        %v739 = vadd.f32 %v723, 1e-05
        %v740 = vadd.f32 %v724, 1e-05
        %v741 = vadd.f32 %v725, 1e-05
        %v742 = vadd.f32 %v726, 1e-05
        %v743 = vrsqrt.pop %v727
        %v744 = vrsqrt.pop %v728
        %v745 = vrsqrt.pop %v729
        %v746 = vrsqrt.pop %v730
        %v747 = vrsqrt.pop %v731
        %v748 = vrsqrt.pop %v732
        %v749 = vrsqrt.pop %v733
        %v750 = vrsqrt.pop %v734
        %v751 = vrsqrt.pop %v735
        %v752 = vrsqrt.pop %v736
        %v753 = vrsqrt.pop %v737
        %v754 = vrsqrt.pop %v738
        %v755 = vrsqrt.pop %v739
        %v756 = vrsqrt.pop %v740
        %v757 = vrsqrt.pop %v741
        %v758 = vrsqrt.pop %v742
        %v759 = vmul.f32 %v631, %v743
        %v760 = vmul.f32 %v632, %v744
        %v761 = vmul.f32 %v633, %v745
        %v762 = vmul.f32 %v634, %v746
        %v763 = vmul.f32 %v635, %v747
        %v764 = vmul.f32 %v636, %v748
        %v765 = vmul.f32 %v637, %v749
        %v766 = vmul.f32 %v638, %v750
        %v767 = vmul.f32 %v639, %v751
        %v768 = vmul.f32 %v640, %v752
        %v769 = vmul.f32 %v641, %v753
        %v770 = vmul.f32 %v642, %v754
        %v771 = vmul.f32 %v643, %v755
        %v772 = vmul.f32 %v644, %v756
        %v773 = vmul.f32 %v645, %v757
        %v774 = vmul.f32 %v646, %v758
        %v775 = vlaneseq
        %v776 = vshrl.u32 %v775, 7
        %v777 = vsub.s32 0, %v776
        %v778 = vrot.slane %v360, %v777
        %v779 = vmul.f32 %v759, %v778
        %v780 = vmul.f32 %v760, %v778
        %v781 = vmul.f32 %v761, %v778
        %v782 = vmul.f32 %v762, %v778
        %v783 = vmul.f32 %v763, %v778
        %v784 = vmul.f32 %v764, %v778
        %v785 = vmul.f32 %v765, %v778
        %v786 = vmul.f32 %v766, %v778
        %v787 = vmul.f32 %v767, %v778
        %v788 = vmul.f32 %v768, %v778
        %v789 = vmul.f32 %v769, %v778
        %v790 = vmul.f32 %v770, %v778
        %v791 = vmul.f32 %v771, %v778
        %v792 = vmul.f32 %v772, %v778
        %v793 = vmul.f32 %v773, %v778
        %v794 = vmul.f32 %v774, %v778
        %v795 = vlaneseq
        %v796 = vshrl.u32 %v795, 7
        %v797 = vsub.s32 0, %v796
        %v798 = vrot.slane %v361, %v797
        %v799 = vadd.f32 %v779, %v798
        %v800 = vadd.f32 %v780, %v798
        %v801 = vadd.f32 %v781, %v798
        %v802 = vadd.f32 %v782, %v798
        %v803 = vadd.f32 %v783, %v798
        %v804 = vadd.f32 %v784, %v798
        %v805 = vadd.f32 %v785, %v798
        %v806 = vadd.f32 %v786, %v798
        %v807 = vadd.f32 %v787, %v798
        %v808 = vadd.f32 %v788, %v798
        %v809 = vadd.f32 %v789, %v798
        %v810 = vadd.f32 %v790, %v798
        %v811 = vadd.f32 %v791, %v798
        %v812 = vadd.f32 %v792, %v798
        %v813 = vadd.f32 %v793, %v798
        %v814 = vadd.f32 %v794, %v798
        %v815 = vmax.f32 %v799, 0.0
        %v816 = vmax.f32 %v800, 0.0
        %v817 = vmax.f32 %v801, 0.0
        %v818 = vmax.f32 %v802, 0.0
        %v819 = vmax.f32 %v803, 0.0
        %v820 = vmax.f32 %v804, 0.0
        %v821 = vmax.f32 %v805, 0.0
        %v822 = vmax.f32 %v806, 0.0
        %v823 = vmax.f32 %v807, 0.0
        %v824 = vmax.f32 %v808, 0.0
        %v825 = vmax.f32 %v809, 0.0
        %v826 = vmax.f32 %v810, 0.0
        %v827 = vmax.f32 %v811, 0.0
        %v828 = vmax.f32 %v812, 0.0
        %v829 = vmax.f32 %v813, 0.0
        %v830 = vmax.f32 %v814, 0.0
        %v831 = vlaneseq
        %v832 = vshrl.u32 %v831, 7
        %v833 = vsub.s32 0, %v832
        %v834 = vrot.slane %v362, %v833
        %v836 = vsel %vm565, %v815, 0
        %v839 = vsel %vm565, %v816, 0
        %v842 = vsel %vm565, %v817, 0
        %v845 = vsel %vm565, %v818, 0
        %v848 = vsel %vm565, %v819, 0
        %v851 = vsel %vm565, %v820, 0
        %v854 = vsel %vm565, %v821, 0
        %v857 = vsel %vm565, %v822, 0
        %v860 = vsel %vm565, %v823, 0
        %v863 = vsel %vm565, %v824, 0
        %v866 = vsel %vm565, %v825, 0
        %v869 = vsel %vm565, %v826, 0
        %v872 = vsel %vm565, %v827, 0
        %v875 = vsel %vm565, %v828, 0
        %v878 = vsel %vm565, %v829, 0
        %v881 = vsel %vm565, %v830, 0
        %883 = vmatprep.subr.mxu0 0.0
        %884 = vmatpush1.msra.mxu0 %v350
        %885 = vmatprep.subr.mxu0 0.0
        %886 = vmatpush1.msra.mxu0 %v351
        %887 = vmatprep.subr.mxu0 0.0
        %888 = vmatpush1.msra.mxu0 %v352
        %889 = vmatprep.subr.mxu0 0.0
        %890 = vmatpush1.msra.mxu0 %v353
        %891 = vmatprep.subr.mxu0 0.0
        %892 = vmatpush1.msra.mxu0 %v354
        %893 = vmatprep.subr.mxu0 0.0
        %894 = vmatpush1.msra.mxu0 %v355
        %895 = vmatprep.subr.mxu0 0.0
        %896 = vmatpush1.msra.mxu0 %v356
        %897 = vmatprep.subr.mxu0 0.0
        %898 = vmatpush1.msra.mxu0 %v357
        %899 = vmatprep.subr.mxu0 0.0
        %900 = vmatpush1.msra.mxu0 0.0
        %901 = vmatprep.subr.mxu0 0.0
        %902 = vmatpush1.msra.mxu0 0.0
        %903 = vmatprep.subr.mxu0 0.0
        %904 = vmatpush1.msra.mxu0 0.0
        %905 = vmatprep.subr.mxu0 0.0
        %906 = vmatpush1.msra.mxu0 0.0
        %907 = vmatprep.subr.mxu0 0.0
        %908 = vmatpush1.msra.mxu0 0.0
        %909 = vmatprep.subr.mxu0 0.0
        %910 = vmatpush1.msra.mxu0 0.0
        %911 = vmatprep.subr.mxu0 0.0
        %912 = vmatpush1.msra.mxu0 0.0
        %913 = vmatprep.subr.mxu0 0.0
        %914 = vmatpush1.msra.mxu0 0.0
        %915 = vmatprep.subr.mxu0 0.0
        %916 = vmatpush1.msra.mxu0 0.0
        %917 = vmatprep.subr.mxu0 0.0
        %918 = vmatpush1.msra.mxu0 0.0
        %919 = vmatprep.subr.mxu0 0.0
        %920 = vmatpush1.msra.mxu0 0.0
        %921 = vmatprep.subr.mxu0 0.0
        %922 = vmatpush1.msra.mxu0 0.0
        %923 = vmatprep.subr.mxu0 0.0
        %924 = vmatpush1.msra.mxu0 0.0
        %925 = vmatprep.subr.mxu0 0.0
        %926 = vmatpush1.msra.mxu0 0.0
        %927 = vmatprep.subr.mxu0 0.0
        %928 = vmatpush1.msra.mxu0 0.0
        %929 = vmatprep.subr.mxu0 0.0
        %930 = vmatpush1.msra.mxu0 0.0
        %931 = vmatprep.subr.mxu0 0.0
        %932 = vmatpush1.msra.mxu0 0.0
        %933 = vmatprep.subr.mxu0 0.0
        %934 = vmatpush1.msra.mxu0 0.0
        %935 = vmatprep.subr.mxu0 0.0
        %936 = vmatpush1.msra.mxu0 0.0
        %937 = vmatprep.subr.mxu0 0.0
        %938 = vmatpush1.msra.mxu0 0.0
        %939 = vmatprep.subr.mxu0 0.0
        %940 = vmatpush1.msra.mxu0 0.0
        %941 = vmatprep.subr.mxu0 0.0
        %942 = vmatpush1.msra.mxu0 0.0
        %943 = vmatprep.subr.mxu0 0.0
        %944 = vmatpush1.msra.mxu0 0.0
        %945 = vmatprep.subr.mxu0 0.0
        %946 = vmatpush1.msra.mxu0 0.0
        %947 = vmatprep.mubr.f32.mxu0 0.0
        %948 = vmatmul.mubr.f32.gmra.mrb[0].mxu0 %v836
        %v949 = vpop.f32.mrb[0].mxu0
        %v950 = vadd.f32 %v834, %v949
        %v951 = vpop.f32.mrb[0].mxu0
        %952 = vmatprep.mubr.f32.mxu0 0.0
        %953 = vmatmul.mubr.f32.gmra.mrb[0].mxu0 %v839
        %v954 = vpop.f32.mrb[0].mxu0
        %v955 = vadd.f32 %v834, %v954
        %v956 = vpop.f32.mrb[0].mxu0
        %957 = vmatprep.mubr.f32.mxu0 0.0
        %958 = vmatmul.mubr.f32.gmra.mrb[0].mxu0 %v842
        %v959 = vpop.f32.mrb[0].mxu0
        %v960 = vadd.f32 %v834, %v959
        %v961 = vpop.f32.mrb[0].mxu0
        %962 = vmatprep.mubr.f32.mxu0 0.0
        %963 = vmatmul.mubr.f32.gmra.mrb[0].mxu0 %v845
        %v964 = vpop.f32.mrb[0].mxu0
        %v965 = vadd.f32 %v834, %v964
        %v966 = vpop.f32.mrb[0].mxu0
        %967 = vmatprep.mubr.f32.mxu0 0.0
        %968 = vmatmul.mubr.f32.gmra.mrb[0].mxu0 %v848
        %v969 = vpop.f32.mrb[0].mxu0
        %v970 = vadd.f32 %v834, %v969
        %v971 = vpop.f32.mrb[0].mxu0
        %972 = vmatprep.mubr.f32.mxu0 0.0
        %973 = vmatmul.mubr.f32.gmra.mrb[0].mxu0 %v851
        %v974 = vpop.f32.mrb[0].mxu0
        %v975 = vadd.f32 %v834, %v974
        %v976 = vpop.f32.mrb[0].mxu0
        %977 = vmatprep.mubr.f32.mxu0 0.0
        %978 = vmatmul.mubr.f32.gmra.mrb[0].mxu0 %v854
        %v979 = vpop.f32.mrb[0].mxu0
        %v980 = vadd.f32 %v834, %v979
        %v981 = vpop.f32.mrb[0].mxu0
        %982 = vmatprep.mubr.f32.mxu0 0.0
        %983 = vmatmul.mubr.f32.gmra.mrb[0].mxu0 %v857
        %v984 = vpop.f32.mrb[0].mxu0
        %v985 = vadd.f32 %v834, %v984
        %v986 = vpop.f32.mrb[0].mxu0
        %987 = vmatprep.mubr.f32.mxu0 0.0
        %988 = vmatmul.mubr.f32.gmra.mrb[0].mxu0 %v860
        %v989 = vpop.f32.mrb[0].mxu0
        %v990 = vadd.f32 %v834, %v989
        %v991 = vpop.f32.mrb[0].mxu0
        %992 = vmatprep.mubr.f32.mxu0 0.0
        %993 = vmatmul.mubr.f32.gmra.mrb[0].mxu0 %v863
        %v994 = vpop.f32.mrb[0].mxu0
        %v995 = vadd.f32 %v834, %v994
        %v996 = vpop.f32.mrb[0].mxu0
        %997 = vmatprep.mubr.f32.mxu0 0.0
        %998 = vmatmul.mubr.f32.gmra.mrb[0].mxu0 %v866
        %v999 = vpop.f32.mrb[0].mxu0
        %v1000 = vadd.f32 %v834, %v999
        %v1001 = vpop.f32.mrb[0].mxu0
        %1002 = vmatprep.mubr.f32.mxu0 0.0
        %1003 = vmatmul.mubr.f32.gmra.mrb[0].mxu0 %v869
        %v1004 = vpop.f32.mrb[0].mxu0
        %v1005 = vadd.f32 %v834, %v1004
        %v1006 = vpop.f32.mrb[0].mxu0
        %1007 = vmatprep.mubr.f32.mxu0 0.0
        %1008 = vmatmul.mubr.f32.gmra.mrb[0].mxu0 %v872
        %v1009 = vpop.f32.mrb[0].mxu0
        %v1010 = vadd.f32 %v834, %v1009
        %v1011 = vpop.f32.mrb[0].mxu0
        %1012 = vmatprep.mubr.f32.mxu0 0.0
        %1013 = vmatmul.mubr.f32.gmra.mrb[0].mxu0 %v875
        %v1014 = vpop.f32.mrb[0].mxu0
        %v1015 = vadd.f32 %v834, %v1014
        %v1016 = vpop.f32.mrb[0].mxu0
        %1017 = vmatprep.mubr.f32.mxu0 0.0
        %1018 = vmatmul.mubr.f32.gmra.mrb[0].mxu0 %v878
        %v1019 = vpop.f32.mrb[0].mxu0
        %v1020 = vadd.f32 %v834, %v1019
        %v1021 = vpop.f32.mrb[0].mxu0
        %1022 = vmatprep.mubr.f32.mxu0 0.0
        %1023 = vmatmul.mubr.f32.gmra.mrb[0].mxu0 %v881
        %v1024 = vpop.f32.mrb[0].mxu0
        %v1025 = vadd.f32 %v834, %v1024
        %v1026 = vpop.f32.mrb[0].mxu0
        %1027 = vdwg.mxu0
        %vm1028 = vcmask 261120
        %v1029 = vsel %vm1028, %v950, 0.0
        %1030 = vadd.xlane.f32.xlu0 %v1029
        %v1031 = vpop.xlane.xlu0 %1030
        %v1032 = vsel %vm1028, %v955, 0.0
        %1033 = vadd.xlane.f32.xlu0 %v1032
        %v1034 = vpop.xlane.xlu0 %1033
        %v1035 = vsel %vm1028, %v960, 0.0
        %1036 = vadd.xlane.f32.xlu0 %v1035
        %v1037 = vpop.xlane.xlu0 %1036
        %v1038 = vsel %vm1028, %v965, 0.0
        %1039 = vadd.xlane.f32.xlu0 %v1038
        %v1040 = vpop.xlane.xlu0 %1039
        %v1041 = vsel %vm1028, %v970, 0.0
        %1042 = vadd.xlane.f32.xlu0 %v1041
        %v1043 = vpop.xlane.xlu0 %1042
        %v1044 = vsel %vm1028, %v975, 0.0
        %1045 = vadd.xlane.f32.xlu0 %v1044
        %v1046 = vpop.xlane.xlu0 %1045
        %v1047 = vsel %vm1028, %v980, 0.0
        %1048 = vadd.xlane.f32.xlu0 %v1047
        %v1049 = vpop.xlane.xlu0 %1048
        %v1050 = vsel %vm1028, %v985, 0.0
        %1051 = vadd.xlane.f32.xlu0 %v1050
        %v1052 = vpop.xlane.xlu0 %1051
        %v1053 = vsel %vm1028, %v990, 0.0
        %1054 = vadd.xlane.f32.xlu0 %v1053
        %v1055 = vpop.xlane.xlu0 %1054
        %v1056 = vsel %vm1028, %v995, 0.0
        %1057 = vadd.xlane.f32.xlu0 %v1056
        %v1058 = vpop.xlane.xlu0 %1057
        %v1059 = vsel %vm1028, %v1000, 0.0
        %1060 = vadd.xlane.f32.xlu0 %v1059
        %v1061 = vpop.xlane.xlu0 %1060
        %v1062 = vsel %vm1028, %v1005, 0.0
        %1063 = vadd.xlane.f32.xlu0 %v1062
        %v1064 = vpop.xlane.xlu0 %1063
        %v1065 = vsel %vm1028, %v1010, 0.0
        %1066 = vadd.xlane.f32.xlu0 %v1065
        %v1067 = vpop.xlane.xlu0 %1066
        %v1068 = vsel %vm1028, %v1015, 0.0
        %1069 = vadd.xlane.f32.xlu0 %v1068
        %v1070 = vpop.xlane.xlu0 %1069
        %v1071 = vsel %vm1028, %v1020, 0.0
        %1072 = vadd.xlane.f32.xlu0 %v1071
        %v1073 = vpop.xlane.xlu0 %1072
        %v1074 = vsel %vm1028, %v1025, 0.0
        %1075 = vadd.xlane.f32.xlu0 %v1074
        %v1076 = vpop.xlane.xlu0 %1075
        %v1077 = vrcp.pop 32.0
        %v1078 = vmul.f32 %v1031, %v1077
        %v1079 = vmul.f32 %v1034, %v1077
        %v1080 = vmul.f32 %v1037, %v1077
        %v1081 = vmul.f32 %v1040, %v1077
        %v1082 = vmul.f32 %v1043, %v1077
        %v1083 = vmul.f32 %v1046, %v1077
        %v1084 = vmul.f32 %v1049, %v1077
        %v1085 = vmul.f32 %v1052, %v1077
        %v1086 = vmul.f32 %v1055, %v1077
        %v1087 = vmul.f32 %v1058, %v1077
        %v1088 = vmul.f32 %v1061, %v1077
        %v1089 = vmul.f32 %v1064, %v1077
        %v1090 = vmul.f32 %v1067, %v1077
        %v1091 = vmul.f32 %v1070, %v1077
        %v1092 = vmul.f32 %v1073, %v1077
        %v1093 = vmul.f32 %v1076, %v1077
        %v1094 = vsub.f32 %v950, %v1078
        %v1095 = vsub.f32 %v955, %v1079
        %v1096 = vsub.f32 %v960, %v1080
        %v1097 = vsub.f32 %v965, %v1081
        %v1098 = vsub.f32 %v970, %v1082
        %v1099 = vsub.f32 %v975, %v1083
        %v1100 = vsub.f32 %v980, %v1084
        %v1101 = vsub.f32 %v985, %v1085
        %v1102 = vsub.f32 %v990, %v1086
        %v1103 = vsub.f32 %v995, %v1087
        %v1104 = vsub.f32 %v1000, %v1088
        %v1105 = vsub.f32 %v1005, %v1089
        %v1106 = vsub.f32 %v1010, %v1090
        %v1107 = vsub.f32 %v1015, %v1091
        %v1108 = vsub.f32 %v1020, %v1092
        %v1109 = vsub.f32 %v1025, %v1093
        %v1110 = vmul.f32 %v1094, %v1094
        %v1111 = vmul.f32 %v1095, %v1095
        %v1112 = vmul.f32 %v1096, %v1096
        %v1113 = vmul.f32 %v1097, %v1097
        %v1114 = vmul.f32 %v1098, %v1098
        %v1115 = vmul.f32 %v1099, %v1099
        %v1116 = vmul.f32 %v1100, %v1100
        %v1117 = vmul.f32 %v1101, %v1101
        %v1118 = vmul.f32 %v1102, %v1102
        %v1119 = vmul.f32 %v1103, %v1103
        %v1120 = vmul.f32 %v1104, %v1104
        %v1121 = vmul.f32 %v1105, %v1105
        %v1122 = vmul.f32 %v1106, %v1106
        %v1123 = vmul.f32 %v1107, %v1107
        %v1124 = vmul.f32 %v1108, %v1108
        %v1125 = vmul.f32 %v1109, %v1109
        %v1126 = vsel %vm1028, %v1110, 0.0
        %1127 = vadd.xlane.f32.xlu0 %v1126
        %v1128 = vpop.xlane.xlu0 %1127
        %v1129 = vsel %vm1028, %v1111, 0.0
        %1130 = vadd.xlane.f32.xlu0 %v1129
        %v1131 = vpop.xlane.xlu0 %1130
        %v1132 = vsel %vm1028, %v1112, 0.0
        %1133 = vadd.xlane.f32.xlu0 %v1132
        %v1134 = vpop.xlane.xlu0 %1133
        %v1135 = vsel %vm1028, %v1113, 0.0
        %1136 = vadd.xlane.f32.xlu0 %v1135
        %v1137 = vpop.xlane.xlu0 %1136
        %v1138 = vsel %vm1028, %v1114, 0.0
        %1139 = vadd.xlane.f32.xlu0 %v1138
        %v1140 = vpop.xlane.xlu0 %1139
        %v1141 = vsel %vm1028, %v1115, 0.0
        %1142 = vadd.xlane.f32.xlu0 %v1141
        %v1143 = vpop.xlane.xlu0 %1142
        %v1144 = vsel %vm1028, %v1116, 0.0
        %1145 = vadd.xlane.f32.xlu0 %v1144
        %v1146 = vpop.xlane.xlu0 %1145
        %v1147 = vsel %vm1028, %v1117, 0.0
        %1148 = vadd.xlane.f32.xlu0 %v1147
        %v1149 = vpop.xlane.xlu0 %1148
        %v1150 = vsel %vm1028, %v1118, 0.0
        %1151 = vadd.xlane.f32.xlu0 %v1150
        %v1152 = vpop.xlane.xlu0 %1151
        %v1153 = vsel %vm1028, %v1119, 0.0
        %1154 = vadd.xlane.f32.xlu0 %v1153
        %v1155 = vpop.xlane.xlu0 %1154
        %v1156 = vsel %vm1028, %v1120, 0.0
        %1157 = vadd.xlane.f32.xlu0 %v1156
        %v1158 = vpop.xlane.xlu0 %1157
        %v1159 = vsel %vm1028, %v1121, 0.0
        %1160 = vadd.xlane.f32.xlu0 %v1159
        %v1161 = vpop.xlane.xlu0 %1160
        %v1162 = vsel %vm1028, %v1122, 0.0
        %1163 = vadd.xlane.f32.xlu0 %v1162
        %v1164 = vpop.xlane.xlu0 %1163
        %v1165 = vsel %vm1028, %v1123, 0.0
        %1166 = vadd.xlane.f32.xlu0 %v1165
        %v1167 = vpop.xlane.xlu0 %1166
        %v1168 = vsel %vm1028, %v1124, 0.0
        %1169 = vadd.xlane.f32.xlu0 %v1168
        %v1170 = vpop.xlane.xlu0 %1169
        %v1171 = vsel %vm1028, %v1125, 0.0
        %1172 = vadd.xlane.f32.xlu0 %v1171
        %v1173 = vpop.xlane.xlu0 %1172
        %v1174 = vmul.f32 %v1128, %v1077
        %v1175 = vmul.f32 %v1131, %v1077
        %v1176 = vmul.f32 %v1134, %v1077
        %v1177 = vmul.f32 %v1137, %v1077
        %v1178 = vmul.f32 %v1140, %v1077
        %v1179 = vmul.f32 %v1143, %v1077
        %v1180 = vmul.f32 %v1146, %v1077
        %v1181 = vmul.f32 %v1149, %v1077
        %v1182 = vmul.f32 %v1152, %v1077
        %v1183 = vmul.f32 %v1155, %v1077
        %v1184 = vmul.f32 %v1158, %v1077
        %v1185 = vmul.f32 %v1161, %v1077
        %v1186 = vmul.f32 %v1164, %v1077
        %v1187 = vmul.f32 %v1167, %v1077
        %v1188 = vmul.f32 %v1170, %v1077
        %v1189 = vmul.f32 %v1173, %v1077
        %v1190 = vadd.f32 %v1174, 1e-05
        %v1191 = vadd.f32 %v1175, 1e-05
        %v1192 = vadd.f32 %v1176, 1e-05
        %v1193 = vadd.f32 %v1177, 1e-05
        %v1194 = vadd.f32 %v1178, 1e-05
        %v1195 = vadd.f32 %v1179, 1e-05
        %v1196 = vadd.f32 %v1180, 1e-05
        %v1197 = vadd.f32 %v1181, 1e-05
        %v1198 = vadd.f32 %v1182, 1e-05
        %v1199 = vadd.f32 %v1183, 1e-05
        %v1200 = vadd.f32 %v1184, 1e-05
        %v1201 = vadd.f32 %v1185, 1e-05
        %v1202 = vadd.f32 %v1186, 1e-05
        %v1203 = vadd.f32 %v1187, 1e-05
        %v1204 = vadd.f32 %v1188, 1e-05
        %v1205 = vadd.f32 %v1189, 1e-05
        %v1206 = vrsqrt.pop %v1190
        %v1207 = vrsqrt.pop %v1191
        %v1208 = vrsqrt.pop %v1192
        %v1209 = vrsqrt.pop %v1193
        %v1210 = vrsqrt.pop %v1194
        %v1211 = vrsqrt.pop %v1195
        %v1212 = vrsqrt.pop %v1196
        %v1213 = vrsqrt.pop %v1197
        %v1214 = vrsqrt.pop %v1198
        %v1215 = vrsqrt.pop %v1199
        %v1216 = vrsqrt.pop %v1200
        %v1217 = vrsqrt.pop %v1201
        %v1218 = vrsqrt.pop %v1202
        %v1219 = vrsqrt.pop %v1203
        %v1220 = vrsqrt.pop %v1204
        %v1221 = vrsqrt.pop %v1205
        %v1222 = vmul.f32 %v1094, %v1206
        %v1223 = vmul.f32 %v1095, %v1207
        %v1224 = vmul.f32 %v1096, %v1208
        %v1225 = vmul.f32 %v1097, %v1209
        %v1226 = vmul.f32 %v1098, %v1210
        %v1227 = vmul.f32 %v1099, %v1211
        %v1228 = vmul.f32 %v1100, %v1212
        %v1229 = vmul.f32 %v1101, %v1213
        %v1230 = vmul.f32 %v1102, %v1214
        %v1231 = vmul.f32 %v1103, %v1215
        %v1232 = vmul.f32 %v1104, %v1216
        %v1233 = vmul.f32 %v1105, %v1217
        %v1234 = vmul.f32 %v1106, %v1218
        %v1235 = vmul.f32 %v1107, %v1219
        %v1236 = vmul.f32 %v1108, %v1220
        %v1237 = vmul.f32 %v1109, %v1221
        %v1238 = vlaneseq
        %v1239 = vshrl.u32 %v1238, 7
        %v1240 = vsub.s32 0, %v1239
        %v1241 = vrot.slane %v363, %v1240
        %v1242 = vmul.f32 %v1222, %v1241
        %v1243 = vmul.f32 %v1223, %v1241
        %v1244 = vmul.f32 %v1224, %v1241
        %v1245 = vmul.f32 %v1225, %v1241
        %v1246 = vmul.f32 %v1226, %v1241
        %v1247 = vmul.f32 %v1227, %v1241
        %v1248 = vmul.f32 %v1228, %v1241
        %v1249 = vmul.f32 %v1229, %v1241
        %v1250 = vmul.f32 %v1230, %v1241
        %v1251 = vmul.f32 %v1231, %v1241
        %v1252 = vmul.f32 %v1232, %v1241
        %v1253 = vmul.f32 %v1233, %v1241
        %v1254 = vmul.f32 %v1234, %v1241
        %v1255 = vmul.f32 %v1235, %v1241
        %v1256 = vmul.f32 %v1236, %v1241
        %v1257 = vmul.f32 %v1237, %v1241
        %v1258 = vlaneseq
        %v1259 = vshrl.u32 %v1258, 7
        %v1260 = vsub.s32 0, %v1259
        %v1261 = vrot.slane %v364, %v1260
        %v1262 = vadd.f32 %v1242, %v1261
        %v1263 = vadd.f32 %v1243, %v1261
        %v1264 = vadd.f32 %v1244, %v1261
        %v1265 = vadd.f32 %v1245, %v1261
        %v1266 = vadd.f32 %v1246, %v1261
        %v1267 = vadd.f32 %v1247, %v1261
        %v1268 = vadd.f32 %v1248, %v1261
        %v1269 = vadd.f32 %v1249, %v1261
        %v1270 = vadd.f32 %v1250, %v1261
        %v1271 = vadd.f32 %v1251, %v1261
        %v1272 = vadd.f32 %v1252, %v1261
        %v1273 = vadd.f32 %v1253, %v1261
        %v1274 = vadd.f32 %v1254, %v1261
        %v1275 = vadd.f32 %v1255, %v1261
        %v1276 = vadd.f32 %v1256, %v1261
        %v1277 = vadd.f32 %v1257, %v1261
        %v1278 = vlaneseq
        %v1279 = vshrl.u32 %v1278, 7
        %v1280 = vsub.s32 0, %v1279
        %v1281 = vrot.slane %v365, %v1280
        %vm1282 = vcmask 31744
        %v1284 = vsel %vm1282, %v332, 0
        %v1287 = vsel %vm1282, %v333, 0
        %v1290 = vsel %vm1282, %v334, 0
        %v1293 = vsel %vm1282, %v335, 0
        %v1296 = vsel %vm1282, %v336, 0
        %v1299 = vsel %vm1282, %v337, 0
        %v1302 = vsel %vm1282, %v338, 0
        %v1305 = vsel %vm1282, %v339, 0
        %v1308 = vsel %vm1282, %v340, 0
        %v1311 = vsel %vm1282, %v341, 0
        %v1314 = vsel %vm1282, %v342, 0
        %v1317 = vsel %vm1282, %v343, 0
        %v1320 = vsel %vm1282, %v344, 0
        %v1323 = vsel %vm1282, %v345, 0
        %v1326 = vsel %vm1282, %v346, 0
        %v1329 = vsel %vm1282, %v347, 0
        %vm1331 = vcmask 1043456
        %v1333 = vsel %vm1331, %v358, 0
        %1335 = vmatprep.subr.mxu0 0.0
        %1336 = vmatpush1.msra.mxu0 %v1333
        %1337 = vmatprep.subr.mxu0 0.0
        %1338 = vmatpush1.msra.mxu0 0.0
        %1339 = vmatprep.subr.mxu0 0.0
        %1340 = vmatpush1.msra.mxu0 0.0
        %1341 = vmatprep.subr.mxu0 0.0
        %1342 = vmatpush1.msra.mxu0 0.0
        %1343 = vmatprep.subr.mxu0 0.0
        %1344 = vmatpush1.msra.mxu0 0.0
        %1345 = vmatprep.subr.mxu0 0.0
        %1346 = vmatpush1.msra.mxu0 0.0
        %1347 = vmatprep.subr.mxu0 0.0
        %1348 = vmatpush1.msra.mxu0 0.0
        %1349 = vmatprep.subr.mxu0 0.0
        %1350 = vmatpush1.msra.mxu0 0.0
        %1351 = vmatprep.subr.mxu0 0.0
        %1352 = vmatpush1.msra.mxu0 0.0
        %1353 = vmatprep.subr.mxu0 0.0
        %1354 = vmatpush1.msra.mxu0 0.0
        %1355 = vmatprep.subr.mxu0 0.0
        %1356 = vmatpush1.msra.mxu0 0.0
        %1357 = vmatprep.subr.mxu0 0.0
        %1358 = vmatpush1.msra.mxu0 0.0
        %1359 = vmatprep.subr.mxu0 0.0
        %1360 = vmatpush1.msra.mxu0 0.0
        %1361 = vmatprep.subr.mxu0 0.0
        %1362 = vmatpush1.msra.mxu0 0.0
        %1363 = vmatprep.subr.mxu0 0.0
        %1364 = vmatpush1.msra.mxu0 0.0
        %1365 = vmatprep.subr.mxu0 0.0
        %1366 = vmatpush1.msra.mxu0 0.0
        %1367 = vmatprep.subr.mxu0 0.0
        %1368 = vmatpush1.msra.mxu0 0.0
        %1369 = vmatprep.subr.mxu0 0.0
        %1370 = vmatpush1.msra.mxu0 0.0
        %1371 = vmatprep.subr.mxu0 0.0
        %1372 = vmatpush1.msra.mxu0 0.0
        %1373 = vmatprep.subr.mxu0 0.0
        %1374 = vmatpush1.msra.mxu0 0.0
        %1375 = vmatprep.subr.mxu0 0.0
        %1376 = vmatpush1.msra.mxu0 0.0
        %1377 = vmatprep.subr.mxu0 0.0
        %1378 = vmatpush1.msra.mxu0 0.0
        %1379 = vmatprep.subr.mxu0 0.0
        %1380 = vmatpush1.msra.mxu0 0.0
        %1381 = vmatprep.subr.mxu0 0.0
        %1382 = vmatpush1.msra.mxu0 0.0
        %1383 = vmatprep.subr.mxu0 0.0
        %1384 = vmatpush1.msra.mxu0 0.0
        %1385 = vmatprep.subr.mxu0 0.0
        %1386 = vmatpush1.msra.mxu0 0.0
        %1387 = vmatprep.subr.mxu0 0.0
        %1388 = vmatpush1.msra.mxu0 0.0
        %1389 = vmatprep.subr.mxu0 0.0
        %1390 = vmatpush1.msra.mxu0 0.0
        %1391 = vmatprep.subr.mxu0 0.0
        %1392 = vmatpush1.msra.mxu0 0.0
        %1393 = vmatprep.subr.mxu0 0.0
        %1394 = vmatpush1.msra.mxu0 0.0
        %1395 = vmatprep.subr.mxu0 0.0
        %1396 = vmatpush1.msra.mxu0 0.0
        %1397 = vmatprep.subr.mxu0 0.0
        %1398 = vmatpush1.msra.mxu0 0.0
        %1399 = vmatprep.mubr.f32.mxu0 0.0
        %1400 = vmatmul.mubr.f32.gmra.mrb[0].mxu0 %v1284
        %v1401 = vpop.f32.mrb[0].mxu0
        %v1402 = vadd.f32 %v1281, %v1401
        %v1403 = vpop.f32.mrb[0].mxu0
        %1404 = vmatprep.mubr.f32.mxu0 0.0
        %1405 = vmatmul.mubr.f32.gmra.mrb[0].mxu0 %v1287
        %v1406 = vpop.f32.mrb[0].mxu0
        %v1407 = vadd.f32 %v1281, %v1406
        %v1408 = vpop.f32.mrb[0].mxu0
        %1409 = vmatprep.mubr.f32.mxu0 0.0
        %1410 = vmatmul.mubr.f32.gmra.mrb[0].mxu0 %v1290
        %v1411 = vpop.f32.mrb[0].mxu0
        %v1412 = vadd.f32 %v1281, %v1411
        %v1413 = vpop.f32.mrb[0].mxu0
        %1414 = vmatprep.mubr.f32.mxu0 0.0
        %1415 = vmatmul.mubr.f32.gmra.mrb[0].mxu0 %v1293
        %v1416 = vpop.f32.mrb[0].mxu0
        %v1417 = vadd.f32 %v1281, %v1416
        %v1418 = vpop.f32.mrb[0].mxu0
        %1419 = vmatprep.mubr.f32.mxu0 0.0
        %1420 = vmatmul.mubr.f32.gmra.mrb[0].mxu0 %v1296
        %v1421 = vpop.f32.mrb[0].mxu0
        %v1422 = vadd.f32 %v1281, %v1421
        %v1423 = vpop.f32.mrb[0].mxu0
        %1424 = vmatprep.mubr.f32.mxu0 0.0
        %1425 = vmatmul.mubr.f32.gmra.mrb[0].mxu0 %v1299
        %v1426 = vpop.f32.mrb[0].mxu0
        %v1427 = vadd.f32 %v1281, %v1426
        %v1428 = vpop.f32.mrb[0].mxu0
        %1429 = vmatprep.mubr.f32.mxu0 0.0
        %1430 = vmatmul.mubr.f32.gmra.mrb[0].mxu0 %v1302
        %v1431 = vpop.f32.mrb[0].mxu0
        %v1432 = vadd.f32 %v1281, %v1431
        %v1433 = vpop.f32.mrb[0].mxu0
        %1434 = vmatprep.mubr.f32.mxu0 0.0
        %1435 = vmatmul.mubr.f32.gmra.mrb[0].mxu0 %v1305
        %v1436 = vpop.f32.mrb[0].mxu0
        %v1437 = vadd.f32 %v1281, %v1436
        %v1438 = vpop.f32.mrb[0].mxu0
        %1439 = vmatprep.mubr.f32.mxu0 0.0
        %1440 = vmatmul.mubr.f32.gmra.mrb[0].mxu0 %v1308
        %v1441 = vpop.f32.mrb[0].mxu0
        %v1442 = vadd.f32 %v1281, %v1441
        %v1443 = vpop.f32.mrb[0].mxu0
        %1444 = vmatprep.mubr.f32.mxu0 0.0
        %1445 = vmatmul.mubr.f32.gmra.mrb[0].mxu0 %v1311
        %v1446 = vpop.f32.mrb[0].mxu0
        %v1447 = vadd.f32 %v1281, %v1446
        %v1448 = vpop.f32.mrb[0].mxu0
        %1449 = vmatprep.mubr.f32.mxu0 0.0
        %1450 = vmatmul.mubr.f32.gmra.mrb[0].mxu0 %v1314
        %v1451 = vpop.f32.mrb[0].mxu0
        %v1452 = vadd.f32 %v1281, %v1451
        %v1453 = vpop.f32.mrb[0].mxu0
        %1454 = vmatprep.mubr.f32.mxu0 0.0
        %1455 = vmatmul.mubr.f32.gmra.mrb[0].mxu0 %v1317
        %v1456 = vpop.f32.mrb[0].mxu0
        %v1457 = vadd.f32 %v1281, %v1456
        %v1458 = vpop.f32.mrb[0].mxu0
        %1459 = vmatprep.mubr.f32.mxu0 0.0
        %1460 = vmatmul.mubr.f32.gmra.mrb[0].mxu0 %v1320
        %v1461 = vpop.f32.mrb[0].mxu0
        %v1462 = vadd.f32 %v1281, %v1461
        %v1463 = vpop.f32.mrb[0].mxu0
        %1464 = vmatprep.mubr.f32.mxu0 0.0
        %1465 = vmatmul.mubr.f32.gmra.mrb[0].mxu0 %v1323
        %v1466 = vpop.f32.mrb[0].mxu0
        %v1467 = vadd.f32 %v1281, %v1466
        %v1468 = vpop.f32.mrb[0].mxu0
        %1469 = vmatprep.mubr.f32.mxu0 0.0
        %1470 = vmatmul.mubr.f32.gmra.mrb[0].mxu0 %v1326
        %v1471 = vpop.f32.mrb[0].mxu0
        %v1472 = vadd.f32 %v1281, %v1471
        %v1473 = vpop.f32.mrb[0].mxu0
        %1474 = vmatprep.mubr.f32.mxu0 0.0
        %1475 = vmatmul.mubr.f32.gmra.mrb[0].mxu0 %v1329
        %v1476 = vpop.f32.mrb[0].mxu0
        %v1477 = vadd.f32 %v1281, %v1476
        %v1478 = vpop.f32.mrb[0].mxu0
        %1479 = vdwg.mxu0
        %v1480 = vmax.f32 %v1402, 0.0
        %v1481 = vmax.f32 %v1407, 0.0
        %v1482 = vmax.f32 %v1412, 0.0
        %v1483 = vmax.f32 %v1417, 0.0
        %v1484 = vmax.f32 %v1422, 0.0
        %v1485 = vmax.f32 %v1427, 0.0
        %v1486 = vmax.f32 %v1432, 0.0
        %v1487 = vmax.f32 %v1437, 0.0
        %v1488 = vmax.f32 %v1442, 0.0
        %v1489 = vmax.f32 %v1447, 0.0
        %v1490 = vmax.f32 %v1452, 0.0
        %v1491 = vmax.f32 %v1457, 0.0
        %v1492 = vmax.f32 %v1462, 0.0
        %v1493 = vmax.f32 %v1467, 0.0
        %v1494 = vmax.f32 %v1472, 0.0
        %v1495 = vmax.f32 %v1477, 0.0
        %v1496 = vadd.f32 %v1262, %v1480
        %v1497 = vadd.f32 %v1263, %v1481
        %v1498 = vadd.f32 %v1264, %v1482
        %v1499 = vadd.f32 %v1265, %v1483
        %v1500 = vadd.f32 %v1266, %v1484
        %v1501 = vadd.f32 %v1267, %v1485
        %v1502 = vadd.f32 %v1268, %v1486
        %v1503 = vadd.f32 %v1269, %v1487
        %v1504 = vadd.f32 %v1270, %v1488
        %v1505 = vadd.f32 %v1271, %v1489
        %v1506 = vadd.f32 %v1272, %v1490
        %v1507 = vadd.f32 %v1273, %v1491
        %v1508 = vadd.f32 %v1274, %v1492
        %v1509 = vadd.f32 %v1275, %v1493
        %v1510 = vadd.f32 %v1276, %v1494
        %v1511 = vadd.f32 %v1277, %v1495
        %v1512 = vmax.f32 %v1496, 0.0
        %v1513 = vmax.f32 %v1497, 0.0
        %v1514 = vmax.f32 %v1498, 0.0
        %v1515 = vmax.f32 %v1499, 0.0
        %v1516 = vmax.f32 %v1500, 0.0
        %v1517 = vmax.f32 %v1501, 0.0
        %v1518 = vmax.f32 %v1502, 0.0
        %v1519 = vmax.f32 %v1503, 0.0
        %v1520 = vmax.f32 %v1504, 0.0
        %v1521 = vmax.f32 %v1505, 0.0
        %v1522 = vmax.f32 %v1506, 0.0
        %v1523 = vmax.f32 %v1507, 0.0
        %v1524 = vmax.f32 %v1508, 0.0
        %v1525 = vmax.f32 %v1509, 0.0
        %v1526 = vmax.f32 %v1510, 0.0
        %v1527 = vmax.f32 %v1511, 0.0
        %s1528 = sld [smem:[#allocation2 + %s24]]
        %v1529 = vstv %s1528
        %v1531 = vsel %vm1028, %v366, 0
        %v1534 = vsel %vm1028, %v1512, 0
        %v1537 = vsel %vm1028, %v1513, 0
        %v1540 = vsel %vm1028, %v1514, 0
        %v1543 = vsel %vm1028, %v1515, 0
        %v1546 = vsel %vm1028, %v1516, 0
        %v1549 = vsel %vm1028, %v1517, 0
        %v1552 = vsel %vm1028, %v1518, 0
        %v1555 = vsel %vm1028, %v1519, 0
        %v1558 = vsel %vm1028, %v1520, 0
        %v1561 = vsel %vm1028, %v1521, 0
        %v1564 = vsel %vm1028, %v1522, 0
        %v1567 = vsel %vm1028, %v1523, 0
        %v1570 = vsel %vm1028, %v1524, 0
        %v1573 = vsel %vm1028, %v1525, 0
        %v1576 = vsel %vm1028, %v1526, 0
        %v1579 = vsel %vm1028, %v1527, 0
        %1581 = vmatprep.subr.mxu0 0.0
        %1582 = vmatpush1.xpose.msra.mxu0 %v1534
        %1583 = vmatprep.subr.mxu0 0.0
        %1584 = vmatpush1.xpose.msra.mxu0 %v1537
        %1585 = vmatprep.subr.mxu0 0.0
        %1586 = vmatpush1.xpose.msra.mxu0 %v1540
        %1587 = vmatprep.subr.mxu0 0.0
        %1588 = vmatpush1.xpose.msra.mxu0 %v1543
        %1589 = vmatprep.subr.mxu0 0.0
        %1590 = vmatpush1.xpose.msra.mxu0 %v1546
        %1591 = vmatprep.subr.mxu0 0.0
        %1592 = vmatpush1.xpose.msra.mxu0 %v1549
        %1593 = vmatprep.subr.mxu0 0.0
        %1594 = vmatpush1.xpose.msra.mxu0 %v1552
        %1595 = vmatprep.subr.mxu0 0.0
        %1596 = vmatpush1.xpose.msra.mxu0 %v1555
        %1597 = vmatprep.subr.mxu0 0.0
        %1598 = vmatpush1.xpose.msra.mxu0 %v1558
        %1599 = vmatprep.subr.mxu0 0.0
        %1600 = vmatpush1.xpose.msra.mxu0 %v1561
        %1601 = vmatprep.subr.mxu0 0.0
        %1602 = vmatpush1.xpose.msra.mxu0 %v1564
        %1603 = vmatprep.subr.mxu0 0.0
        %1604 = vmatpush1.xpose.msra.mxu0 %v1567
        %1605 = vmatprep.subr.mxu0 0.0
        %1606 = vmatpush1.xpose.msra.mxu0 %v1570
        %1607 = vmatprep.subr.mxu0 0.0
        %1608 = vmatpush1.xpose.msra.mxu0 %v1573
        %1609 = vmatprep.subr.mxu0 0.0
        %1610 = vmatpush1.xpose.msra.mxu0 %v1576
        %1611 = vmatprep.subr.mxu0 0.0
        %1612 = vmatpush1.xpose.msra.mxu0 %v1579
        %1613 = vmatprep.subr.mxu0 0.0
        %1614 = vmatpush1.xpose.msra.mxu0 0.0
        %1615 = vmatprep.subr.mxu0 0.0
        %1616 = vmatpush1.xpose.msra.mxu0 0.0
        %1617 = vmatprep.subr.mxu0 0.0
        %1618 = vmatpush1.xpose.msra.mxu0 0.0
        %1619 = vmatprep.subr.mxu0 0.0
        %1620 = vmatpush1.xpose.msra.mxu0 0.0
        %1621 = vmatprep.subr.mxu0 0.0
        %1622 = vmatpush1.xpose.msra.mxu0 0.0
        %1623 = vmatprep.subr.mxu0 0.0
        %1624 = vmatpush1.xpose.msra.mxu0 0.0
        %1625 = vmatprep.subr.mxu0 0.0
        %1626 = vmatpush1.xpose.msra.mxu0 0.0
        %1627 = vmatprep.subr.mxu0 0.0
        %1628 = vmatpush1.xpose.msra.mxu0 0.0
        %1629 = vmatprep.subr.mxu0 0.0
        %1630 = vmatpush1.xpose.msra.mxu0 0.0
        %1631 = vmatprep.subr.mxu0 0.0
        %1632 = vmatpush1.xpose.msra.mxu0 0.0
        %1633 = vmatprep.subr.mxu0 0.0
        %1634 = vmatpush1.xpose.msra.mxu0 0.0
        %1635 = vmatprep.subr.mxu0 0.0
        %1636 = vmatpush1.xpose.msra.mxu0 0.0
        %1637 = vmatprep.subr.mxu0 0.0
        %1638 = vmatpush1.xpose.msra.mxu0 0.0
        %1639 = vmatprep.subr.mxu0 0.0
        %1640 = vmatpush1.xpose.msra.mxu0 0.0
        %1641 = vmatprep.subr.mxu0 0.0
        %1642 = vmatpush1.xpose.msra.mxu0 0.0
        %1643 = vmatprep.subr.mxu0 0.0
        %1644 = vmatpush1.xpose.msra.mxu0 0.0
        %1645 = vmatprep.mubr.f32.mxu0 0.0
        %1646 = vmatmul.mubr.f32.gmra.mrb[0].mxu0 %v1531
        %v1647 = vpop.f32.mrb[0].mxu0
        %v1648 = vadd.f32 %v1529, %v1647
        %v1649 = vpop.f32.mrb[0].mxu0
        %1650 = vdwg.mxu0
        %1651 = vst [vmem:[%s292] sm:$0xff] %v1648
        %s1652 = sand.u32 %s167, 1
        %s1653 = scalar_lea.sflag [#allocation3], %s1652
        %s1654 = sand.u32 %s167, 1
        %s1655 = smul.addr %s1654, 8
        %s1656 = scalar_lea.vmem [#allocation5], %s1655
        // Predicated region
        $region45: #{tpu_custom_call.1} parent=39 // pred_check
          %p1657 = pneg %p177
        $region46: #{tpu_custom_call.1} parent=39 // pred_check_branch
          %1659 = sbr.rel (%p1657) target = $region48
        $region47: #{tpu_custom_call.1} parent=39 // pred_region
          %s1660 = sadd.s32 %s24, %s25
          %s1662 = ssub.s32 128, 128
          %1663 = vsyncadd %s1653, %s1662
          %s1664 = smul.addr %s1660, 128
          %s1665 = scalar_lea.hbm %s5, %s1664
          %s1667 = sshll.u32 %s1656, 4
          %s1668 = int_to_ptr.vmem [resolvable:$true] %s1667
          %1670 = dma.vmem_to_hbm [thread:$0]  %s1668, 128, %s1665, %s1653
        $region48: #{tpu_custom_call.1} parent=39 // pred_fallthru
          _
      $region40: #{tpu_custom_call.1} parent=5 // pred_fallthru
        _
      %p1671 = scmp.le.s32.totalorder 2, %s15
      // Predicated region
      $region49: #{tpu_custom_call.1} parent=5 // pred_check
        %p1672 = pneg %p1671
      $region50: #{tpu_custom_call.1} parent=5 // pred_check_branch
        %1674 = sbr.rel (%p1672) target = $region52
      $region51: #{tpu_custom_call.1} parent=5 // pred_region
        %s1675 = ssub.s32 %s15, 2
        // Predicated region
        $region53: #{tpu_custom_call.1} parent=51 // pred_check
          %p1676 = pneg %p183
        $region54: #{tpu_custom_call.1} parent=51 // pred_check_branch
          %1678 = sbr.rel (%p1676) target = $region56
        $region55: #{tpu_custom_call.1} parent=51 // pred_region
          %s1679 = sand.u32 %s168, 1
          %s1680 = scalar_lea.sflag [#allocation3], %s1679
          %s1681 = sand.u32 %s168, 1
          %s1682 = smul.addr %s1681, 8
          %s1683 = scalar_lea.vmem [#allocation5], %s1682
          %1684 = dma.done %s1680, 128
        $region56: #{tpu_custom_call.1} parent=51 // pred_fallthru
          _
      $region52: #{tpu_custom_call.1} parent=5 // pred_fallthru
        _
    $region6: #{tpu_custom_call.1} parent=1 // loop_footer
      %s19 = sadd.s32 1, %s15
    $region7: #{tpu_custom_call.1} parent=1 // loop_footer_branch
      %14 = sbr.rel target = $region3
    $region8: #{tpu_custom_call.1} parent=1 // loop_exit
      _
    %1685 = vsyncpa [#allocation3], 1
    %s1686 = scalar_lea.sflag [#allocation3], 1
    %1687 = vsyncpa %s1686, 1
    %1688 = vsyncpa [#allocation4], 1
    %s1689 = scalar_lea.sflag [#allocation4], 1
    %1690 = vsyncpa %s1689, 1

</llo_original>
